<compile_context>
chip_gen: v7x
topology: tpu7x:2x2x1
jax: 0.10.0
libtpu: 0.0.40
codegen_flags: <defaults>
</compile_context>

<pallas_src>
import functools

import jax
import jax.numpy as jnp
import numpy as np
from jax.experimental import pallas as pl
from jax.experimental.pallas import tpu as pltpu


# ---------------------------------------------------------------------------
# Kernel
# ---------------------------------------------------------------------------
def lstm_classifier_kernel(patches_ref, gmask_ref, wconv_ref, bconv_ref,
                           wih_ref, whh_ref, bgate_ref, wlin_ref, blin_ref,
                           out_ref, *, L_out, Bb, Hp):
    patches = patches_ref[...]                       # (L_out*Bb, 128), zero-padded lanes

    # F.normalize(inputs, dim=2): per-original-timestep L2 norm over the C-lane
    # group of each window position, computed as one lane-dense MXU matmul of
    # the squared patches against a 0/1 group-sum mask (pad lanes stay 0).
    sq = patches * patches
    norm = jnp.sqrt(jnp.dot(sq, gmask_ref[...],
                            preferred_element_type=jnp.float32))
    xn = patches / jnp.maximum(norm, 1e-12)

    # Conv1d(kernel=K, stride=K) + ReLU for ALL windows at once (hoisted).
    a = jnp.maximum(jnp.dot(xn, wconv_ref[...],
                            preferred_element_type=jnp.float32)
                    + bconv_ref[...], 0.0)           # (L_out*Bb, 128)

    # Input-gate projection for all timesteps at once (hoisted).  Gate blocks
    # are padded to 128 lanes each, so 4*Hp = 512 and every slice below is a
    # full-vreg, lane-aligned slice.
    gx = (jnp.dot(a, wih_ref[...], preferred_element_type=jnp.float32)
          + bgate_ref[...])                          # (L_out*Bb, 4*Hp)

    whh = whh_ref[...]                               # (Hp, 4*Hp)
    h = jnp.zeros((Bb, Hp), jnp.float32)
    c = jnp.zeros((Bb, Hp), jnp.float32)

    # Serial LSTM recurrence — only the h-projection and VPU/EUP gate math left.
    # L_out is small (5) so a static unroll is fine.
    # TODO(synk): for long sequences, switch to lax.fori_loop(..., unroll=True)
    # with gx staged in a VMEM scratch to bound live ranges.
    for t in range(L_out):
        g = gx[t * Bb:(t + 1) * Bb, :] + jnp.dot(
            h, whh, preferred_element_type=jnp.float32)      # (Bb, 4*Hp)
        i_g = jax.nn.sigmoid(g[:, 0 * Hp:1 * Hp])
        f_g = jax.nn.sigmoid(g[:, 1 * Hp:2 * Hp])
        g_g = jnp.tanh(g[:, 2 * Hp:3 * Hp])
        o_g = jax.nn.sigmoid(g[:, 3 * Hp:4 * Hp])
        c = f_g * c + i_g * g_g
        h = o_g * jnp.tanh(c)

    # Final Linear, lane-dense (Bb, 128) store; wrapper slices back to (B, O).
    out_ref[...] = (jnp.dot(h, wlin_ref[...],
                            preferred_element_type=jnp.float32)
                    + blin_ref[...])


# ---------------------------------------------------------------------------
# Parameter padding (pure layout plumbing; all pad entries are exactly zero)
# ---------------------------------------------------------------------------
def _pad_params(params, *, K, C, E, H, O, KCpad, Ep, Hp, Op):
    wconv = jnp.zeros((KCpad, Ep), jnp.float32).at[:K * C, :E].set(
        params["w_conv"])
    bconv = jnp.zeros((1, Ep), jnp.float32).at[:, :E].set(params["b_conv"])

    wih = jnp.zeros((Ep, 4 * Hp), jnp.float32)
    whh = jnp.zeros((Hp, 4 * Hp), jnp.float32)
    bg = jnp.zeros((1, 4 * Hp), jnp.float32)
    for g in range(4):
        wih = wih.at[:E, g * Hp:g * Hp + H].set(
            params["w_ih"][:, g * H:(g + 1) * H])
        whh = whh.at[:H, g * Hp:g * Hp + H].set(
            params["w_hh"][:, g * H:(g + 1) * H])
        bg = bg.at[:, g * Hp:g * Hp + H].set(
            params["b_gate"][:, g * H:(g + 1) * H])

    wlin = jnp.zeros((Hp, Op), jnp.float32).at[:H, :O].set(params["w_lin"])
    blin = jnp.zeros((1, Op), jnp.float32).at[:, :O].set(params["b_lin"])
    return dict(w_conv=wconv, b_conv=bconv, w_ih=wih, w_hh=whh, b_gate=bg,
                w_lin=wlin, b_lin=blin)


# ---------------------------------------------------------------------------
# Wrapper
# ---------------------------------------------------------------------------
def lstm_classifier_forward(x, params, *, kernel_size=3, stride=3):
    B, T, C = x.shape
    K, S = kernel_size, stride
    L_out = (T - K) // S + 1
    E = params["w_conv"].shape[1]
    H = params["w_hh"].shape[0]
    O = params["w_lin"].shape[1]

    # Lane-dense padded dims (multiples of 128).
    KCpad = max(128, ((K * C + 127) // 128) * 128)
    Ep = max(128, ((E + 127) // 128) * 128)
    Hp = max(128, ((H + 127) // 128) * 128)
    Op = max(128, ((O + 127) // 128) * 128)

    # im2col (t-major so each timestep is a contiguous row block in the kernel).
    if S == K:
        xw = x[:, :L_out * K, :].reshape(B, L_out, K * C)
    else:
        xw = jnp.stack([x[:, t * S:t * S + K, :].reshape(B, K * C)
                        for t in range(L_out)], axis=1)
    patches = jnp.transpose(xw, (1, 0, 2)).reshape(L_out * B, K * C)
    patches = jnp.pad(patches, ((0, 0), (0, KCpad - K * C)))

    # 0/1 group-sum mask for in-kernel per-timestep L2 normalization.
    gm = np.zeros((KCpad, KCpad), np.float32)
    for k in range(K):
        gm[k * C:(k + 1) * C, k * C:(k + 1) * C] = 1.0
    gmask = jnp.asarray(gm)

    pp = _pad_params(params, K=K, C=C, E=E, H=H, O=O,
                     KCpad=KCpad, Ep=Ep, Hp=Hp, Op=Op)

    kern = functools.partial(lstm_classifier_kernel, L_out=L_out, Bb=B, Hp=Hp)
    vmem = pl.BlockSpec(memory_space=pltpu.MemorySpace.VMEM)
    # TODO(synk): when B grows beyond toy size, add a parallel batch grid
    # (dimension_semantics=("parallel",)) with weights given constant index_maps
    # so v7x's second TensorCore is used and blocks stay inside 64 MiB VMEM.
    out_p = pl.pallas_call(
        kern,
        out_shape=jax.ShapeDtypeStruct((B, Op), jnp.float32),
        in_specs=[vmem] * 9,
        out_specs=vmem,
    )(patches, gmask, pp["w_conv"], pp["b_conv"], pp["w_ih"], pp["w_hh"],
      pp["b_gate"], pp["w_lin"], pp["b_lin"])
    return out_p[:, :O]


# ---------------------------------------------------------------------------
# Canonical (unpadded) parameters + pure-JAX reference
# ---------------------------------------------------------------------------
def init_params(key, input_size, embedding_dim, hidden_size, output_size,
                kernel_size):
    ks = jax.random.split(key, 8)
    u = lambda k, shape, s: jax.random.uniform(k, shape, jnp.float32, -s, s)

    # Conv1d weight (E, C, K) -> reorder to (K, C, E) -> flatten (K*C, E)
    w_conv_pt = u(ks[0], (embedding_dim, input_size, kernel_size), 0.5)
    w_conv = jnp.transpose(w_conv_pt, (2, 1, 0)).reshape(
        kernel_size * input_size, embedding_dim)
    b_conv = u(ks[1], (1, embedding_dim), 0.5)

    # LSTMCell weights: PyTorch (4H, E)/(4H, H) -> transposed for x @ W.T
    w_ih = u(ks[2], (4 * hidden_size, embedding_dim), 0.2).T
    w_hh = u(ks[3], (4 * hidden_size, hidden_size), 0.2).T
    b_gate = (u(ks[4], (1, 4 * hidden_size), 0.2)
              + u(ks[5], (1, 4 * hidden_size), 0.2))          # b_ih + b_hh

    # Linear: PyTorch (O, H) -> (H, O)
    w_lin = u(ks[6], (output_size, hidden_size), 0.2).T
    b_lin = u(ks[7], (1, output_size), 0.2)

    return dict(w_conv=w_conv, b_conv=b_conv, w_ih=w_ih, w_hh=w_hh,
                b_gate=b_gate, w_lin=w_lin, b_lin=b_lin)


def ref_forward(x, params, kernel_size=3, stride=3):
    # Pure-JAX reference mirroring the PyTorch mode='plain' forward.
    B, T, C = x.shape
    nrm = jnp.sqrt(jnp.sum(x * x, axis=2, keepdims=True))
    xn = x / jnp.maximum(nrm, 1e-12)
    L = (T - kernel_size) // stride + 1
    H = params["w_hh"].shape[0]
    h = jnp.zeros((B, H), jnp.float32)
    c = jnp.zeros((B, H), jnp.float32)
    for t in range(L):
        patch = xn[:, t * stride:t * stride + kernel_size, :].reshape(B, -1)
        a = jnp.maximum(patch @ params["w_conv"] + params["b_conv"], 0.0)
        g = a @ params["w_ih"] + h @ params["w_hh"] + params["b_gate"]
        i_g = jax.nn.sigmoid(g[:, :H])
        f_g = jax.nn.sigmoid(g[:, H:2 * H])
        g_g = jnp.tanh(g[:, 2 * H:3 * H])
        o_g = jax.nn.sigmoid(g[:, 3 * H:])
        c = f_g * c + i_g * g_g
        h = o_g * jnp.tanh(c)
    return h @ params["w_lin"] + params["b_lin"]


if __name__ == "__main__":
    # batch=2, seq=16, input_size=4, embedding_dim=64, hidden=32, output=5,
    # kernel=3, stride=3  ->  L_out = 5 LSTM steps.
    B, T, C = 2, 16, 4
    E, H, O, K, S = 64, 32, 5, 3, 3

    key = jax.random.PRNGKey(0)
    k_x, k_p = jax.random.split(key)
    x = jax.random.normal(k_x, (B, T, C), jnp.float32)
    params = init_params(k_p, input_size=C, embedding_dim=E, hidden_size=H,
                         output_size=O, kernel_size=K)

    out = lstm_classifier_forward(x, params, kernel_size=K, stride=S)
    out = jax.block_until_ready(out)

    ref = jax.block_until_ready(ref_forward(x, params, kernel_size=K, stride=S))
    assert out.shape == (B, O)
    np.testing.assert_allclose(np.asarray(out), np.asarray(ref),
                               rtol=1e-5, atol=1e-5)
    print("KERNEL_OK")
</pallas_src>

<mosaic_0001>
module attributes {stable_mosaic.version = 11 : i64} {
  func.func @lstm_classifier_kernel(%arg0: memref<10x128xf32, #tpu.memory_space<vmem>>, %arg1: memref<128x128xf32, #tpu.memory_space<vmem>>, %arg2: memref<128x128xf32, #tpu.memory_space<vmem>>, %arg3: memref<1x128xf32, #tpu.memory_space<vmem>>, %arg4: memref<128x512xf32, #tpu.memory_space<vmem>>, %arg5: memref<128x512xf32, #tpu.memory_space<vmem>>, %arg6: memref<1x512xf32, #tpu.memory_space<vmem>>, %arg7: memref<128x128xf32, #tpu.memory_space<vmem>>, %arg8: memref<1x128xf32, #tpu.memory_space<vmem>>, %arg9: memref<2x128xf32, #tpu.memory_space<vmem>>) attributes {dimension_semantics = [], scalar_prefetch = 0 : i64, scratch_operands = 0 : i64, tpu.core_type = #tpu.core_type<tc>} {
    %c0 = arith.constant 0 : index
    %c0_0 = arith.constant 0 : index
    %0 = vector.load %arg0[%c0, %c0_0] : memref<10x128xf32, #tpu.memory_space<vmem>>, vector<10x128xf32>
    %1 = arith.mulf %0, %0 : vector<10x128xf32>
    %c0_1 = arith.constant 0 : index
    %c0_2 = arith.constant 0 : index
    %2 = vector.load %arg1[%c0_1, %c0_2] : memref<128x128xf32, #tpu.memory_space<vmem>>, vector<128x128xf32>
    %cst = arith.constant dense<0.000000e+00> : vector<10x128xf32>
    %3 = tpu.matmul %1, %2, %cst {dimension_numbers = #tpu.dot_dimension_numbers<[1], [0], [0], [1], [0, 0, 1, 1], [], []>} : vector<10x128xf32>, vector<128x128xf32>, vector<10x128xf32> -> vector<10x128xf32>
    %4 = math.sqrt %3 : vector<10x128xf32>
    %cst_3 = arith.constant 9.99999996E-13 : f32
    %5 = vector.broadcast %cst_3 : f32 to vector<10x128xf32>
    %6 = arith.maximumf %4, %5 : vector<10x128xf32>
    %7 = arith.divf %0, %6 : vector<10x128xf32>
    %c0_4 = arith.constant 0 : index
    %c0_5 = arith.constant 0 : index
    %8 = vector.load %arg2[%c0_4, %c0_5] : memref<128x128xf32, #tpu.memory_space<vmem>>, vector<128x128xf32>
    %cst_6 = arith.constant dense<0.000000e+00> : vector<10x128xf32>
    %9 = tpu.matmul %7, %8, %cst_6 {dimension_numbers = #tpu.dot_dimension_numbers<[1], [0], [0], [1], [0, 0, 1, 1], [], []>} : vector<10x128xf32>, vector<128x128xf32>, vector<10x128xf32> -> vector<10x128xf32>
    %c0_7 = arith.constant 0 : index
    %c0_8 = arith.constant 0 : index
    %10 = vector.load %arg3[%c0_7, %c0_8] : memref<1x128xf32, #tpu.memory_space<vmem>>, vector<1x128xf32>
    %11 = vector.broadcast %10 : vector<1x128xf32> to vector<10x128xf32>
    %12 = arith.addf %9, %11 : vector<10x128xf32>
    %cst_9 = arith.constant 0.000000e+00 : f32
    %13 = vector.broadcast %cst_9 : f32 to vector<10x128xf32>
    %14 = arith.maximumf %12, %13 : vector<10x128xf32>
    %c0_10 = arith.constant 0 : index
    %c0_11 = arith.constant 0 : index
    %15 = vector.load %arg4[%c0_10, %c0_11] : memref<128x512xf32, #tpu.memory_space<vmem>>, vector<128x512xf32>
    %cst_12 = arith.constant dense<0.000000e+00> : vector<10x512xf32>
    %16 = tpu.matmul %14, %15, %cst_12 {dimension_numbers = #tpu.dot_dimension_numbers<[1], [0], [0], [1], [0, 0, 1, 1], [], []>} : vector<10x128xf32>, vector<128x512xf32>, vector<10x512xf32> -> vector<10x512xf32>
    %c0_13 = arith.constant 0 : index
    %c0_14 = arith.constant 0 : index
    %17 = vector.load %arg6[%c0_13, %c0_14] : memref<1x512xf32, #tpu.memory_space<vmem>>, vector<1x512xf32>
    %18 = vector.broadcast %17 : vector<1x512xf32> to vector<10x512xf32>
    %19 = arith.addf %16, %18 : vector<10x512xf32>
    %c0_15 = arith.constant 0 : index
    %c0_16 = arith.constant 0 : index
    %20 = vector.load %arg5[%c0_15, %c0_16] : memref<128x512xf32, #tpu.memory_space<vmem>>, vector<128x512xf32>
    %cst_17 = arith.constant 0.000000e+00 : f32
    %21 = vector.broadcast %cst_17 : f32 to vector<2x128xf32>
    %cst_18 = arith.constant 0.000000e+00 : f32
    %22 = vector.broadcast %cst_18 : f32 to vector<2x128xf32>
    %23 = vector.extract_strided_slice %19 {offsets = [0, 0], sizes = [2, 512], strides = [1, 1]} : vector<10x512xf32> to vector<2x512xf32>
    %cst_19 = arith.constant dense<0.000000e+00> : vector<2x512xf32>
    %24 = tpu.matmul %21, %20, %cst_19 {dimension_numbers = #tpu.dot_dimension_numbers<[1], [0], [0], [1], [0, 0, 1, 1], [], []>} : vector<2x128xf32>, vector<128x512xf32>, vector<2x512xf32> -> vector<2x512xf32>
    %25 = arith.addf %23, %24 : vector<2x512xf32>
    %26 = vector.extract_strided_slice %25 {offsets = [0, 0], sizes = [2, 128], strides = [1, 1]} : vector<2x512xf32> to vector<2x128xf32>
    %27 = arith.negf %26 : vector<2x128xf32>
    %28 = math.exp %27 : vector<2x128xf32>
    %cst_20 = arith.constant 1.000000e+00 : f32
    %29 = vector.broadcast %cst_20 : f32 to vector<2x128xf32>
    %30 = arith.addf %29, %28 : vector<2x128xf32>
    %31 = arith.divf %29, %30 : vector<2x128xf32>
    %32 = vector.extract_strided_slice %25 {offsets = [0, 128], sizes = [2, 128], strides = [1, 1]} : vector<2x512xf32> to vector<2x128xf32>
    %33 = arith.negf %32 : vector<2x128xf32>
    %34 = math.exp %33 : vector<2x128xf32>
    %cst_21 = arith.constant 1.000000e+00 : f32
    %35 = vector.broadcast %cst_21 : f32 to vector<2x128xf32>
    %36 = arith.addf %35, %34 : vector<2x128xf32>
    %37 = arith.divf %35, %36 : vector<2x128xf32>
    %38 = vector.extract_strided_slice %25 {offsets = [0, 256], sizes = [2, 128], strides = [1, 1]} : vector<2x512xf32> to vector<2x128xf32>
    %39 = math.tanh %38 : vector<2x128xf32>
    %40 = vector.extract_strided_slice %25 {offsets = [0, 384], sizes = [2, 128], strides = [1, 1]} : vector<2x512xf32> to vector<2x128xf32>
    %41 = arith.negf %40 : vector<2x128xf32>
    %42 = math.exp %41 : vector<2x128xf32>
    %cst_22 = arith.constant 1.000000e+00 : f32
    %43 = vector.broadcast %cst_22 : f32 to vector<2x128xf32>
    %44 = arith.addf %43, %42 : vector<2x128xf32>
    %45 = arith.divf %43, %44 : vector<2x128xf32>
    %46 = arith.mulf %37, %22 : vector<2x128xf32>
    %47 = arith.mulf %31, %39 : vector<2x128xf32>
    %48 = arith.addf %46, %47 : vector<2x128xf32>
    %49 = math.tanh %48 : vector<2x128xf32>
    %50 = arith.mulf %45, %49 : vector<2x128xf32>
    %51 = vector.extract_strided_slice %19 {offsets = [2, 0], sizes = [2, 512], strides = [1, 1]} : vector<10x512xf32> to vector<2x512xf32>
    %cst_23 = arith.constant dense<0.000000e+00> : vector<2x512xf32>
    %52 = tpu.matmul %50, %20, %cst_23 {dimension_numbers = #tpu.dot_dimension_numbers<[1], [0], [0], [1], [0, 0, 1, 1], [], []>} : vector<2x128xf32>, vector<128x512xf32>, vector<2x512xf32> -> vector<2x512xf32>
    %53 = arith.addf %51, %52 : vector<2x512xf32>
    %54 = vector.extract_strided_slice %53 {offsets = [0, 0], sizes = [2, 128], strides = [1, 1]} : vector<2x512xf32> to vector<2x128xf32>
    %55 = arith.negf %54 : vector<2x128xf32>
    %56 = math.exp %55 : vector<2x128xf32>
    %cst_24 = arith.constant 1.000000e+00 : f32
    %57 = vector.broadcast %cst_24 : f32 to vector<2x128xf32>
    %58 = arith.addf %57, %56 : vector<2x128xf32>
    %59 = arith.divf %57, %58 : vector<2x128xf32>
    %60 = vector.extract_strided_slice %53 {offsets = [0, 128], sizes = [2, 128], strides = [1, 1]} : vector<2x512xf32> to vector<2x128xf32>
    %61 = arith.negf %60 : vector<2x128xf32>
    %62 = math.exp %61 : vector<2x128xf32>
    %cst_25 = arith.constant 1.000000e+00 : f32
    %63 = vector.broadcast %cst_25 : f32 to vector<2x128xf32>
    %64 = arith.addf %63, %62 : vector<2x128xf32>
    %65 = arith.divf %63, %64 : vector<2x128xf32>
    %66 = vector.extract_strided_slice %53 {offsets = [0, 256], sizes = [2, 128], strides = [1, 1]} : vector<2x512xf32> to vector<2x128xf32>
    %67 = math.tanh %66 : vector<2x128xf32>
    %68 = vector.extract_strided_slice %53 {offsets = [0, 384], sizes = [2, 128], strides = [1, 1]} : vector<2x512xf32> to vector<2x128xf32>
    %69 = arith.negf %68 : vector<2x128xf32>
    %70 = math.exp %69 : vector<2x128xf32>
    %cst_26 = arith.constant 1.000000e+00 : f32
    %71 = vector.broadcast %cst_26 : f32 to vector<2x128xf32>
    %72 = arith.addf %71, %70 : vector<2x128xf32>
    %73 = arith.divf %71, %72 : vector<2x128xf32>
    %74 = arith.mulf %65, %48 : vector<2x128xf32>
    %75 = arith.mulf %59, %67 : vector<2x128xf32>
    %76 = arith.addf %74, %75 : vector<2x128xf32>
    %77 = math.tanh %76 : vector<2x128xf32>
    %78 = arith.mulf %73, %77 : vector<2x128xf32>
    %79 = vector.extract_strided_slice %19 {offsets = [4, 0], sizes = [2, 512], strides = [1, 1]} : vector<10x512xf32> to vector<2x512xf32>
    %cst_27 = arith.constant dense<0.000000e+00> : vector<2x512xf32>
    %80 = tpu.matmul %78, %20, %cst_27 {dimension_numbers = #tpu.dot_dimension_numbers<[1], [0], [0], [1], [0, 0, 1, 1], [], []>} : vector<2x128xf32>, vector<128x512xf32>, vector<2x512xf32> -> vector<2x512xf32>
    %81 = arith.addf %79, %80 : vector<2x512xf32>
    %82 = vector.extract_strided_slice %81 {offsets = [0, 0], sizes = [2, 128], strides = [1, 1]} : vector<2x512xf32> to vector<2x128xf32>
    %83 = arith.negf %82 : vector<2x128xf32>
    %84 = math.exp %83 : vector<2x128xf32>
    %cst_28 = arith.constant 1.000000e+00 : f32
    %85 = vector.broadcast %cst_28 : f32 to vector<2x128xf32>
    %86 = arith.addf %85, %84 : vector<2x128xf32>
    %87 = arith.divf %85, %86 : vector<2x128xf32>
    %88 = vector.extract_strided_slice %81 {offsets = [0, 128], sizes = [2, 128], strides = [1, 1]} : vector<2x512xf32> to vector<2x128xf32>
    %89 = arith.negf %88 : vector<2x128xf32>
    %90 = math.exp %89 : vector<2x128xf32>
    %cst_29 = arith.constant 1.000000e+00 : f32
    %91 = vector.broadcast %cst_29 : f32 to vector<2x128xf32>
    %92 = arith.addf %91, %90 : vector<2x128xf32>
    %93 = arith.divf %91, %92 : vector<2x128xf32>
    %94 = vector.extract_strided_slice %81 {offsets = [0, 256], sizes = [2, 128], strides = [1, 1]} : vector<2x512xf32> to vector<2x128xf32>
    %95 = math.tanh %94 : vector<2x128xf32>
    %96 = vector.extract_strided_slice %81 {offsets = [0, 384], sizes = [2, 128], strides = [1, 1]} : vector<2x512xf32> to vector<2x128xf32>
    %97 = arith.negf %96 : vector<2x128xf32>
    %98 = math.exp %97 : vector<2x128xf32>
    %cst_30 = arith.constant 1.000000e+00 : f32
    %99 = vector.broadcast %cst_30 : f32 to vector<2x128xf32>
    %100 = arith.addf %99, %98 : vector<2x128xf32>
    %101 = arith.divf %99, %100 : vector<2x128xf32>
    %102 = arith.mulf %93, %76 : vector<2x128xf32>
    %103 = arith.mulf %87, %95 : vector<2x128xf32>
    %104 = arith.addf %102, %103 : vector<2x128xf32>
    %105 = math.tanh %104 : vector<2x128xf32>
    %106 = arith.mulf %101, %105 : vector<2x128xf32>
    %107 = vector.extract_strided_slice %19 {offsets = [6, 0], sizes = [2, 512], strides = [1, 1]} : vector<10x512xf32> to vector<2x512xf32>
    %cst_31 = arith.constant dense<0.000000e+00> : vector<2x512xf32>
    %108 = tpu.matmul %106, %20, %cst_31 {dimension_numbers = #tpu.dot_dimension_numbers<[1], [0], [0], [1], [0, 0, 1, 1], [], []>} : vector<2x128xf32>, vector<128x512xf32>, vector<2x512xf32> -> vector<2x512xf32>
    %109 = arith.addf %107, %108 : vector<2x512xf32>
    %110 = vector.extract_strided_slice %109 {offsets = [0, 0], sizes = [2, 128], strides = [1, 1]} : vector<2x512xf32> to vector<2x128xf32>
    %111 = arith.negf %110 : vector<2x128xf32>
    %112 = math.exp %111 : vector<2x128xf32>
    %cst_32 = arith.constant 1.000000e+00 : f32
    %113 = vector.broadcast %cst_32 : f32 to vector<2x128xf32>
    %114 = arith.addf %113, %112 : vector<2x128xf32>
    %115 = arith.divf %113, %114 : vector<2x128xf32>
    %116 = vector.extract_strided_slice %109 {offsets = [0, 128], sizes = [2, 128], strides = [1, 1]} : vector<2x512xf32> to vector<2x128xf32>
    %117 = arith.negf %116 : vector<2x128xf32>
    %118 = math.exp %117 : vector<2x128xf32>
    %cst_33 = arith.constant 1.000000e+00 : f32
    %119 = vector.broadcast %cst_33 : f32 to vector<2x128xf32>
    %120 = arith.addf %119, %118 : vector<2x128xf32>
    %121 = arith.divf %119, %120 : vector<2x128xf32>
    %122 = vector.extract_strided_slice %109 {offsets = [0, 256], sizes = [2, 128], strides = [1, 1]} : vector<2x512xf32> to vector<2x128xf32>
    %123 = math.tanh %122 : vector<2x128xf32>
    %124 = vector.extract_strided_slice %109 {offsets = [0, 384], sizes = [2, 128], strides = [1, 1]} : vector<2x512xf32> to vector<2x128xf32>
    %125 = arith.negf %124 : vector<2x128xf32>
    %126 = math.exp %125 : vector<2x128xf32>
    %cst_34 = arith.constant 1.000000e+00 : f32
    %127 = vector.broadcast %cst_34 : f32 to vector<2x128xf32>
    %128 = arith.addf %127, %126 : vector<2x128xf32>
    %129 = arith.divf %127, %128 : vector<2x128xf32>
    %130 = arith.mulf %121, %104 : vector<2x128xf32>
    %131 = arith.mulf %115, %123 : vector<2x128xf32>
    %132 = arith.addf %130, %131 : vector<2x128xf32>
    %133 = math.tanh %132 : vector<2x128xf32>
    %134 = arith.mulf %129, %133 : vector<2x128xf32>
    %135 = vector.extract_strided_slice %19 {offsets = [8, 0], sizes = [2, 512], strides = [1, 1]} : vector<10x512xf32> to vector<2x512xf32>
    %cst_35 = arith.constant dense<0.000000e+00> : vector<2x512xf32>
    %136 = tpu.matmul %134, %20, %cst_35 {dimension_numbers = #tpu.dot_dimension_numbers<[1], [0], [0], [1], [0, 0, 1, 1], [], []>} : vector<2x128xf32>, vector<128x512xf32>, vector<2x512xf32> -> vector<2x512xf32>
    %137 = arith.addf %135, %136 : vector<2x512xf32>
    %138 = vector.extract_strided_slice %137 {offsets = [0, 0], sizes = [2, 128], strides = [1, 1]} : vector<2x512xf32> to vector<2x128xf32>
    %139 = arith.negf %138 : vector<2x128xf32>
    %140 = math.exp %139 : vector<2x128xf32>
    %cst_36 = arith.constant 1.000000e+00 : f32
    %141 = vector.broadcast %cst_36 : f32 to vector<2x128xf32>
    %142 = arith.addf %141, %140 : vector<2x128xf32>
    %143 = arith.divf %141, %142 : vector<2x128xf32>
    %144 = vector.extract_strided_slice %137 {offsets = [0, 128], sizes = [2, 128], strides = [1, 1]} : vector<2x512xf32> to vector<2x128xf32>
    %145 = arith.negf %144 : vector<2x128xf32>
    %146 = math.exp %145 : vector<2x128xf32>
    %cst_37 = arith.constant 1.000000e+00 : f32
    %147 = vector.broadcast %cst_37 : f32 to vector<2x128xf32>
    %148 = arith.addf %147, %146 : vector<2x128xf32>
    %149 = arith.divf %147, %148 : vector<2x128xf32>
    %150 = vector.extract_strided_slice %137 {offsets = [0, 256], sizes = [2, 128], strides = [1, 1]} : vector<2x512xf32> to vector<2x128xf32>
    %151 = math.tanh %150 : vector<2x128xf32>
    %152 = vector.extract_strided_slice %137 {offsets = [0, 384], sizes = [2, 128], strides = [1, 1]} : vector<2x512xf32> to vector<2x128xf32>
    %153 = arith.negf %152 : vector<2x128xf32>
    %154 = math.exp %153 : vector<2x128xf32>
    %cst_38 = arith.constant 1.000000e+00 : f32
    %155 = vector.broadcast %cst_38 : f32 to vector<2x128xf32>
    %156 = arith.addf %155, %154 : vector<2x128xf32>
    %157 = arith.divf %155, %156 : vector<2x128xf32>
    %158 = arith.mulf %149, %132 : vector<2x128xf32>
    %159 = arith.mulf %143, %151 : vector<2x128xf32>
    %160 = arith.addf %158, %159 : vector<2x128xf32>
    %161 = math.tanh %160 : vector<2x128xf32>
    %162 = arith.mulf %157, %161 : vector<2x128xf32>
    %c0_39 = arith.constant 0 : index
    %c0_40 = arith.constant 0 : index
    %163 = vector.load %arg7[%c0_39, %c0_40] : memref<128x128xf32, #tpu.memory_space<vmem>>, vector<128x128xf32>
    %cst_41 = arith.constant dense<0.000000e+00> : vector<2x128xf32>
    %164 = tpu.matmul %162, %163, %cst_41 {dimension_numbers = #tpu.dot_dimension_numbers<[1], [0], [0], [1], [0, 0, 1, 1], [], []>} : vector<2x128xf32>, vector<128x128xf32>, vector<2x128xf32> -> vector<2x128xf32>
    %c0_42 = arith.constant 0 : index
    %c0_43 = arith.constant 0 : index
    %165 = vector.load %arg8[%c0_42, %c0_43] : memref<1x128xf32, #tpu.memory_space<vmem>>, vector<1x128xf32>
    %166 = vector.broadcast %165 : vector<1x128xf32> to vector<2x128xf32>
    %167 = arith.addf %164, %166 : vector<2x128xf32>
    %c0_44 = arith.constant 0 : index
    %c0_45 = arith.constant 0 : index
    %168 = vector.load %arg9[%c0_44, %c0_45] : memref<2x128xf32, #tpu.memory_space<vmem>>, vector<2x128xf32>
    tpu.vector_store %arg9[%c0_44, %c0_45], %167 {strides = array<i32>} : memref<2x128xf32, #tpu.memory_space<vmem>>, vector<2x128xf32>,
    return
  }
}

</mosaic_0001>

<llo_original>
// kernel: tpu_custom_call.1
$region0: #{tpu_custom_call.1}
  #allocation0 [shape = 'u32[]', space=smem, size = 0x4, offset = 0x4, fixed_abs, tag = 'smem constant byte address 0x4 - core index']
  #allocation1 [shape = 'u32[144,128]{1,0:T(1,128)}', space=vmem, size = 0x12000, scoped, tag = 'internal scratch']
  %s0 = inlined_call_operand.hbm [shape: f32[10,128], index: 0, kind: input, shape index: {}]
  %s1 = inlined_call_operand.hbm [shape: f32[128,128], index: 1, kind: input, shape index: {}]
  %s2 = inlined_call_operand.hbm [shape: f32[128,128], index: 2, kind: input, shape index: {}]
  %s3 = inlined_call_operand.vmem [shape: f32[1,128], index: 3, kind: input, shape index: {}]
  %s4 = inlined_call_operand.hbm [shape: f32[128,512], index: 4, kind: input, shape index: {}]
  %s5 = inlined_call_operand.hbm [shape: f32[128,512], index: 5, kind: input, shape index: {}]
  %s6 = inlined_call_operand.vmem [shape: f32[1,512], index: 6, kind: input, shape index: {}]
  %s7 = inlined_call_operand.hbm [shape: f32[128,128], index: 7, kind: input, shape index: {}]
  %s8 = inlined_call_operand.vmem [shape: f32[1,128], index: 8, kind: input, shape index: {}]
  %s9 = inlined_call_operand.hbm [shape: f32[2,128], index: 9, kind: output, shape index: {}]
  %s10 = sld [smem:[#allocation0]]
  $region70: #{tpu_custom_call.1} parent=0
    _
  %s12 = ssub.s32 1, %s10
  %s13 = scalar_select 0, %s12, %s10
  $region1: #{tpu_custom_call.1} parent=0
    #allocation2 [shape = 'u8[8192]{0}', space=vmem, size = 0x2000, scoped, tag = 'input window, operand 0, single buffered']
    #allocation3 [shape = 's32[1]{0}', space=sflag, size = 0x4, scoped, tag = 'scoped memory for tpu_custom_call.1']
    #allocation4 [shape = 's32[1]{0}', space=sflag, size = 0x4, scoped, tag = 'scoped memory for tpu_custom_call.1']
    #allocation5 [shape = 'u8[65536]{0}', space=vmem, size = 0x10000, scoped, tag = 'input window, operand 1, single buffered']
    #allocation6 [shape = 's32[1]{0}', space=sflag, size = 0x4, scoped, tag = 'scoped memory for tpu_custom_call.1']
    #allocation7 [shape = 'u8[65536]{0}', space=vmem, size = 0x10000, scoped, tag = 'input window, operand 2, single buffered']
    #allocation8 [shape = 'u8[262144]{0}', space=vmem, size = 0x40000, scoped, tag = 'input window, operand 4, single buffered']
    #allocation9 [shape = 's32[1]{0}', space=sflag, size = 0x4, scoped, tag = 'scoped memory for tpu_custom_call.1']
    #allocation10 [shape = 'u8[262144]{0}', space=vmem, size = 0x40000, scoped, tag = 'input window, operand 5, single buffered']
    #allocation11 [shape = 'u8[65536]{0}', space=vmem, size = 0x10000, scoped, tag = 'input window, operand 7, single buffered']
    #allocation12 [shape = 's32[1]{0}', space=sflag, size = 0x4, scoped, tag = 'scoped memory for tpu_custom_call.1']
    #allocation13 [shape = 'u8[1024]{0}', space=vmem, size = 0x400, scoped, tag = 'output window, operand 0, single buffered']
    %14 = vsyncpa [#allocation3], 0
    %15 = vsyncpa [#allocation6], 0
    %16 = vsyncpa [#allocation9], 0
    %17 = vsyncpa [#allocation12], 0
    %18 = vsyncpa [#allocation4], 0
    // Predicated region
    $region2: #{tpu_custom_call.1} parent=1 // pred_check
      _
    $region3: #{tpu_custom_call.1} parent=1 // pred_check_branch
      %20 = sbr.rel (0) target = $region5
    $region4: #{tpu_custom_call.1} parent=1 // pred_region
      %s22 = ssub.s32 256, 256
      %23 = vsyncadd [#allocation3], %s22
      %s24 = sshll.u32 [#allocation2], 4
      %s25 = int_to_ptr.vmem [resolvable:$true] %s24
      %30 = dma.hbm_to_vmem [thread:$0]  %s0, 256, %s25, [#allocation3], 128, 128, 8
    $region5: #{tpu_custom_call.1} parent=1 // pred_fallthru
      _
    // Predicated region
    $region6: #{tpu_custom_call.1} parent=1 // pred_check
      _
    $region7: #{tpu_custom_call.1} parent=1 // pred_check_branch
      %32 = sbr.rel (0) target = $region9
    $region8: #{tpu_custom_call.1} parent=1 // pred_region
      %s34 = ssub.s32 2048, 2048
      %35 = vsyncadd [#allocation6], %s34
      %s36 = sshll.u32 [#allocation5], 4
      %s37 = int_to_ptr.vmem [resolvable:$true] %s36
      %42 = dma.hbm_to_vmem [thread:$0]  %s1, 2048, %s37, [#allocation6], 128, 128, 8
    $region9: #{tpu_custom_call.1} parent=1 // pred_fallthru
      _
    // Predicated region
    $region10: #{tpu_custom_call.1} parent=1 // pred_check
      _
    $region11: #{tpu_custom_call.1} parent=1 // pred_check_branch
      %44 = sbr.rel (0) target = $region13
    $region12: #{tpu_custom_call.1} parent=1 // pred_region
      %s46 = ssub.s32 2048, 2048
      %47 = vsyncadd [#allocation6], %s46
      %s48 = sshll.u32 [#allocation7], 4
      %s49 = int_to_ptr.vmem [resolvable:$true] %s48
      %54 = dma.hbm_to_vmem [thread:$0]  %s2, 2048, %s49, [#allocation6], 128, 128, 8
    $region13: #{tpu_custom_call.1} parent=1 // pred_fallthru
      _
    // Predicated region
    $region14: #{tpu_custom_call.1} parent=1 // pred_check
      _
    $region15: #{tpu_custom_call.1} parent=1 // pred_check_branch
      %56 = sbr.rel (0) target = $region17
    $region16: #{tpu_custom_call.1} parent=1 // pred_region
      _
    $region17: #{tpu_custom_call.1} parent=1 // pred_fallthru
      _
    // Predicated region
    $region18: #{tpu_custom_call.1} parent=1 // pred_check
      _
    $region19: #{tpu_custom_call.1} parent=1 // pred_check_branch
      %58 = sbr.rel (0) target = $region21
    $region20: #{tpu_custom_call.1} parent=1 // pred_region
      %s60 = ssub.s32 8192, 8192
      %61 = vsyncadd [#allocation9], %s60
      %s62 = sshll.u32 [#allocation8], 4
      %s63 = int_to_ptr.vmem [resolvable:$true] %s62
      %68 = dma.hbm_to_vmem [thread:$0]  %s4, 8192, %s63, [#allocation9], 512, 512, 32
    $region21: #{tpu_custom_call.1} parent=1 // pred_fallthru
      _
    // Predicated region
    $region22: #{tpu_custom_call.1} parent=1 // pred_check
      _
    $region23: #{tpu_custom_call.1} parent=1 // pred_check_branch
      %70 = sbr.rel (0) target = $region25
    $region24: #{tpu_custom_call.1} parent=1 // pred_region
      %s72 = ssub.s32 8192, 8192
      %73 = vsyncadd [#allocation9], %s72
      %s74 = sshll.u32 [#allocation10], 4
      %s75 = int_to_ptr.vmem [resolvable:$true] %s74
      %80 = dma.hbm_to_vmem [thread:$0]  %s5, 8192, %s75, [#allocation9], 512, 512, 32
    $region25: #{tpu_custom_call.1} parent=1 // pred_fallthru
      _
    // Predicated region
    $region26: #{tpu_custom_call.1} parent=1 // pred_check
      _
    $region27: #{tpu_custom_call.1} parent=1 // pred_check_branch
      %82 = sbr.rel (0) target = $region29
    $region28: #{tpu_custom_call.1} parent=1 // pred_region
      _
    $region29: #{tpu_custom_call.1} parent=1 // pred_fallthru
      _
    // Predicated region
    $region30: #{tpu_custom_call.1} parent=1 // pred_check
      _
    $region31: #{tpu_custom_call.1} parent=1 // pred_check_branch
      %84 = sbr.rel (0) target = $region33
    $region32: #{tpu_custom_call.1} parent=1 // pred_region
      %s86 = ssub.s32 2048, 2048
      %87 = vsyncadd [#allocation12], %s86
      %s88 = sshll.u32 [#allocation11], 4
      %s89 = int_to_ptr.vmem [resolvable:$true] %s88
      %94 = dma.hbm_to_vmem [thread:$0]  %s7, 2048, %s89, [#allocation12], 128, 128, 8
    $region33: #{tpu_custom_call.1} parent=1 // pred_fallthru
      _
    // Predicated region
    $region34: #{tpu_custom_call.1} parent=1 // pred_check
      _
    $region35: #{tpu_custom_call.1} parent=1 // pred_check_branch
      %96 = sbr.rel (0) target = $region37
    $region36: #{tpu_custom_call.1} parent=1 // pred_region
      _
    $region37: #{tpu_custom_call.1} parent=1 // pred_fallthru
      _
    // Predicated region
    $region38: #{tpu_custom_call.1} parent=1 // pred_check
      _
    $region39: #{tpu_custom_call.1} parent=1 // pred_check_branch
      %98 = sbr.rel (0) target = $region41
    $region40: #{tpu_custom_call.1} parent=1 // pred_region
      %99 = dma.done [#allocation3], 256
    $region41: #{tpu_custom_call.1} parent=1 // pred_fallthru
      _
    // Predicated region
    $region42: #{tpu_custom_call.1} parent=1 // pred_check
      _
    $region43: #{tpu_custom_call.1} parent=1 // pred_check_branch
      %101 = sbr.rel (0) target = $region45
    $region44: #{tpu_custom_call.1} parent=1 // pred_region
      %102 = dma.done [#allocation6], 2048
    $region45: #{tpu_custom_call.1} parent=1 // pred_fallthru
      _
    // Predicated region
    $region46: #{tpu_custom_call.1} parent=1 // pred_check
      _
    $region47: #{tpu_custom_call.1} parent=1 // pred_check_branch
      %104 = sbr.rel (0) target = $region49
    $region48: #{tpu_custom_call.1} parent=1 // pred_region
      %105 = dma.done [#allocation6], 2048
    $region49: #{tpu_custom_call.1} parent=1 // pred_fallthru
      _
    // Predicated region
    $region50: #{tpu_custom_call.1} parent=1 // pred_check
      _
    $region51: #{tpu_custom_call.1} parent=1 // pred_check_branch
      %107 = sbr.rel (0) target = $region53
    $region52: #{tpu_custom_call.1} parent=1 // pred_region
      %108 = dma.done [#allocation9], 8192
    $region53: #{tpu_custom_call.1} parent=1 // pred_fallthru
      _
    // Predicated region
    $region54: #{tpu_custom_call.1} parent=1 // pred_check
      _
    $region55: #{tpu_custom_call.1} parent=1 // pred_check_branch
      %110 = sbr.rel (0) target = $region57
    $region56: #{tpu_custom_call.1} parent=1 // pred_region
      %111 = dma.done [#allocation9], 8192
    $region57: #{tpu_custom_call.1} parent=1 // pred_fallthru
      _
    // Predicated region
    $region58: #{tpu_custom_call.1} parent=1 // pred_check
      _
    $region59: #{tpu_custom_call.1} parent=1 // pred_check_branch
      %113 = sbr.rel (0) target = $region61
    $region60: #{tpu_custom_call.1} parent=1 // pred_region
      %114 = dma.done [#allocation12], 2048
    $region61: #{tpu_custom_call.1} parent=1 // pred_fallthru
      _
    %v115 = vld [vmem:[#allocation2] sm:$0xff]
    %v116 = vld [vmem:[#allocation2 + $0x8] sm:$0x3]
    %v117 = vmul.f32 %v115, %v115
    %v118 = vmul.f32 %v116, %v116
    %v119 = vld [vmem:[#allocation5] sm:$0xff]
    %v120 = vld [vmem:[#allocation5 + $0x8] sm:$0xff]
    %v121 = vld [vmem:[#allocation5 + $0x10] sm:$0xff]
    %v122 = vld [vmem:[#allocation5 + $0x18] sm:$0xff]
    %v123 = vld [vmem:[#allocation5 + $0x20] sm:$0xff]
    %v124 = vld [vmem:[#allocation5 + $0x28] sm:$0xff]
    %v125 = vld [vmem:[#allocation5 + $0x30] sm:$0xff]
    %v126 = vld [vmem:[#allocation5 + $0x38] sm:$0xff]
    %v127 = vld [vmem:[#allocation5 + $0x40] sm:$0xff]
    %v128 = vld [vmem:[#allocation5 + $0x48] sm:$0xff]
    %v129 = vld [vmem:[#allocation5 + $0x50] sm:$0xff]
    %v130 = vld [vmem:[#allocation5 + $0x58] sm:$0xff]
    %v131 = vld [vmem:[#allocation5 + $0x60] sm:$0xff]
    %v132 = vld [vmem:[#allocation5 + $0x68] sm:$0xff]
    %v133 = vld [vmem:[#allocation5 + $0x70] sm:$0xff]
    %v134 = vld [vmem:[#allocation5 + $0x78] sm:$0xff]
    %135 = vmatprep.subr.mxu0 0.0
    %136 = vmatpush1.msra.mxu0 %v119
    %137 = vmatprep.subr.mxu0 0.0
    %138 = vmatpush1.msra.mxu0 %v120
    %139 = vmatprep.subr.mxu0 0.0
    %140 = vmatpush1.msra.mxu0 %v121
    %141 = vmatprep.subr.mxu0 0.0
    %142 = vmatpush1.msra.mxu0 %v122
    %143 = vmatprep.subr.mxu0 0.0
    %144 = vmatpush1.msra.mxu0 %v123
    %145 = vmatprep.subr.mxu0 0.0
    %146 = vmatpush1.msra.mxu0 %v124
    %147 = vmatprep.subr.mxu0 0.0
    %148 = vmatpush1.msra.mxu0 %v125
    %149 = vmatprep.subr.mxu0 0.0
    %150 = vmatpush1.msra.mxu0 %v126
    %151 = vmatprep.subr.mxu0 0.0
    %152 = vmatpush1.msra.mxu0 %v127
    %153 = vmatprep.subr.mxu0 0.0
    %154 = vmatpush1.msra.mxu0 %v128
    %155 = vmatprep.subr.mxu0 0.0
    %156 = vmatpush1.msra.mxu0 %v129
    %157 = vmatprep.subr.mxu0 0.0
    %158 = vmatpush1.msra.mxu0 %v130
    %159 = vmatprep.subr.mxu0 0.0
    %160 = vmatpush1.msra.mxu0 %v131
    %161 = vmatprep.subr.mxu0 0.0
    %162 = vmatpush1.msra.mxu0 %v132
    %163 = vmatprep.subr.mxu0 0.0
    %164 = vmatpush1.msra.mxu0 %v133
    %165 = vmatprep.subr.mxu0 0.0
    %166 = vmatpush1.msra.mxu0 %v134
    %167 = vmatprep.subr.mxu0 0.0
    %168 = vmatpush1.msra.mxu0 0.0
    %169 = vmatprep.subr.mxu0 0.0
    %170 = vmatpush1.msra.mxu0 0.0
    %171 = vmatprep.subr.mxu0 0.0
    %172 = vmatpush1.msra.mxu0 0.0
    %173 = vmatprep.subr.mxu0 0.0
    %174 = vmatpush1.msra.mxu0 0.0
    %175 = vmatprep.subr.mxu0 0.0
    %176 = vmatpush1.msra.mxu0 0.0
    %177 = vmatprep.subr.mxu0 0.0
    %178 = vmatpush1.msra.mxu0 0.0
    %179 = vmatprep.subr.mxu0 0.0
    %180 = vmatpush1.msra.mxu0 0.0
    %181 = vmatprep.subr.mxu0 0.0
    %182 = vmatpush1.msra.mxu0 0.0
    %183 = vmatprep.subr.mxu0 0.0
    %184 = vmatpush1.msra.mxu0 0.0
    %185 = vmatprep.subr.mxu0 0.0
    %186 = vmatpush1.msra.mxu0 0.0
    %187 = vmatprep.subr.mxu0 0.0
    %188 = vmatpush1.msra.mxu0 0.0
    %189 = vmatprep.subr.mxu0 0.0
    %190 = vmatpush1.msra.mxu0 0.0
    %191 = vmatprep.subr.mxu0 0.0
    %192 = vmatpush1.msra.mxu0 0.0
    %193 = vmatprep.subr.mxu0 0.0
    %194 = vmatpush1.msra.mxu0 0.0
    %195 = vmatprep.subr.mxu0 0.0
    %196 = vmatpush1.msra.mxu0 0.0
    %197 = vmatprep.subr.mxu0 0.0
    %198 = vmatpush1.msra.mxu0 0.0
    %199 = vmatprep.mubr.f32.mxu0 0.0
    %200 = vmatmul.mubr.f32.gmra.mrb[0].mxu0 %v117
    %v201 = vpop.f32.mrb[0].mxu0
    %v202 = vadd.f32 0.0, %v201
    %v203 = vpop.f32.mrb[0].mxu0
    %204 = vmatprep.mubr.f32.mxu0 0.0
    %205 = vmatmul.mubr.f32.gmra.mrb[0].mxu0 %v118
    %v206 = vpop.f32.mrb[0].mxu0
    %v207 = vadd.f32 0.0, %v206
    %v208 = vpop.f32.mrb[0].mxu0
    %209 = vdwg.mxu0
    %v210 = vrsqrt.pop %v202
    %v211 = vmul.f32 %v202, %v210
    %vm212 = vcmp.eq.f32.partialorder %v202, inf
    %v213 = vsel %vm212, %v202, %v211
    %vm214 = vcmp.eq.f32.partialorder %v202, 0.0
    %v215 = vand.u32 %v202, 2147483648
    %v216 = vsel %vm214, %v215, %v213
    %v217 = vrsqrt.pop %v207
    %v218 = vmul.f32 %v207, %v217
    %vm219 = vcmp.eq.f32.partialorder %v207, inf
    %v220 = vsel %vm219, %v207, %v218
    %vm221 = vcmp.eq.f32.partialorder %v207, 0.0
    %v222 = vand.u32 %v207, 2147483648
    %v223 = vsel %vm221, %v222, %v220
    %v224 = vmax.f32 %v216, 1e-12
    %v225 = vmax.f32 %v223, 1e-12
    %v226 = vrcp.pop %v224
    %v227 = vmul.f32 %v115, %v226
    %v228 = vrcp.pop %v225
    %v229 = vmul.f32 %v116, %v228
    %v230 = vld [vmem:[#allocation7] sm:$0xff]
    %v231 = vld [vmem:[#allocation7 + $0x8] sm:$0xff]
    %v232 = vld [vmem:[#allocation7 + $0x10] sm:$0xff]
    %v233 = vld [vmem:[#allocation7 + $0x18] sm:$0xff]
    %v234 = vld [vmem:[#allocation7 + $0x20] sm:$0xff]
    %v235 = vld [vmem:[#allocation7 + $0x28] sm:$0xff]
    %v236 = vld [vmem:[#allocation7 + $0x30] sm:$0xff]
    %v237 = vld [vmem:[#allocation7 + $0x38] sm:$0xff]
    %v238 = vld [vmem:[#allocation7 + $0x40] sm:$0xff]
    %v239 = vld [vmem:[#allocation7 + $0x48] sm:$0xff]
    %v240 = vld [vmem:[#allocation7 + $0x50] sm:$0xff]
    %v241 = vld [vmem:[#allocation7 + $0x58] sm:$0xff]
    %v242 = vld [vmem:[#allocation7 + $0x60] sm:$0xff]
    %v243 = vld [vmem:[#allocation7 + $0x68] sm:$0xff]
    %v244 = vld [vmem:[#allocation7 + $0x70] sm:$0xff]
    %v245 = vld [vmem:[#allocation7 + $0x78] sm:$0xff]
    %v246 = vld [vmem:[%s3] sm:$0x1]
    %v248 = vlaneseq
    %v249 = vshrl.u32 %v248, 7
    %v250 = vsub.s32 0, %v249
    %v251 = vrot.slane %v246, %v250
    %253 = vmatprep.subr.mxu0 0.0
    %254 = vmatpush1.msra.mxu0 %v230
    %255 = vmatprep.subr.mxu0 0.0
    %256 = vmatpush1.msra.mxu0 %v231
    %257 = vmatprep.subr.mxu0 0.0
    %258 = vmatpush1.msra.mxu0 %v232
    %259 = vmatprep.subr.mxu0 0.0
    %260 = vmatpush1.msra.mxu0 %v233
    %261 = vmatprep.subr.mxu0 0.0
    %262 = vmatpush1.msra.mxu0 %v234
    %263 = vmatprep.subr.mxu0 0.0
    %264 = vmatpush1.msra.mxu0 %v235
    %265 = vmatprep.subr.mxu0 0.0
    %266 = vmatpush1.msra.mxu0 %v236
    %267 = vmatprep.subr.mxu0 0.0
    %268 = vmatpush1.msra.mxu0 %v237
    %269 = vmatprep.subr.mxu0 0.0
    %270 = vmatpush1.msra.mxu0 %v238
    %271 = vmatprep.subr.mxu0 0.0
    %272 = vmatpush1.msra.mxu0 %v239
    %273 = vmatprep.subr.mxu0 0.0
    %274 = vmatpush1.msra.mxu0 %v240
    %275 = vmatprep.subr.mxu0 0.0
    %276 = vmatpush1.msra.mxu0 %v241
    %277 = vmatprep.subr.mxu0 0.0
    %278 = vmatpush1.msra.mxu0 %v242
    %279 = vmatprep.subr.mxu0 0.0
    %280 = vmatpush1.msra.mxu0 %v243
    %281 = vmatprep.subr.mxu0 0.0
    %282 = vmatpush1.msra.mxu0 %v244
    %283 = vmatprep.subr.mxu0 0.0
    %284 = vmatpush1.msra.mxu0 %v245
    %285 = vmatprep.subr.mxu0 0.0
    %286 = vmatpush1.msra.mxu0 0.0
    %287 = vmatprep.subr.mxu0 0.0
    %288 = vmatpush1.msra.mxu0 0.0
    %289 = vmatprep.subr.mxu0 0.0
    %290 = vmatpush1.msra.mxu0 0.0
    %291 = vmatprep.subr.mxu0 0.0
    %292 = vmatpush1.msra.mxu0 0.0
    %293 = vmatprep.subr.mxu0 0.0
    %294 = vmatpush1.msra.mxu0 0.0
    %295 = vmatprep.subr.mxu0 0.0
    %296 = vmatpush1.msra.mxu0 0.0
    %297 = vmatprep.subr.mxu0 0.0
    %298 = vmatpush1.msra.mxu0 0.0
    %299 = vmatprep.subr.mxu0 0.0
    %300 = vmatpush1.msra.mxu0 0.0
    %301 = vmatprep.subr.mxu0 0.0
    %302 = vmatpush1.msra.mxu0 0.0
    %303 = vmatprep.subr.mxu0 0.0
    %304 = vmatpush1.msra.mxu0 0.0
    %305 = vmatprep.subr.mxu0 0.0
    %306 = vmatpush1.msra.mxu0 0.0
    %307 = vmatprep.subr.mxu0 0.0
    %308 = vmatpush1.msra.mxu0 0.0
    %309 = vmatprep.subr.mxu0 0.0
    %310 = vmatpush1.msra.mxu0 0.0
    %311 = vmatprep.subr.mxu0 0.0
    %312 = vmatpush1.msra.mxu0 0.0
    %313 = vmatprep.subr.mxu0 0.0
    %314 = vmatpush1.msra.mxu0 0.0
    %315 = vmatprep.subr.mxu0 0.0
    %316 = vmatpush1.msra.mxu0 0.0
    %317 = vmatprep.mubr.f32.mxu0 0.0
    %318 = vmatmul.mubr.f32.gmra.mrb[0].mxu0 %v227
    %v319 = vpop.f32.mrb[0].mxu0
    %v320 = vadd.f32 %v251, %v319
    %v321 = vpop.f32.mrb[0].mxu0
    %322 = vmatprep.mubr.f32.mxu0 0.0
    %323 = vmatmul.mubr.f32.gmra.mrb[0].mxu0 %v229
    %v324 = vpop.f32.mrb[0].mxu0
    %v325 = vadd.f32 %v251, %v324
    %v326 = vpop.f32.mrb[0].mxu0
    %327 = vdwg.mxu0
    %v328 = vmax.f32 %v320, 0.0
    %v329 = vmax.f32 %v325, 0.0
    %v330 = vld [vmem:[#allocation8] sm:$0xff]
    %v331 = vld [vmem:[#allocation8 + $0x8] sm:$0xff]
    %v332 = vld [vmem:[#allocation8 + $0x10] sm:$0xff]
    %v333 = vld [vmem:[#allocation8 + $0x18] sm:$0xff]
    %v334 = vld [vmem:[#allocation8 + $0x20] sm:$0xff]
    %v335 = vld [vmem:[#allocation8 + $0x28] sm:$0xff]
    %v336 = vld [vmem:[#allocation8 + $0x30] sm:$0xff]
    %v337 = vld [vmem:[#allocation8 + $0x38] sm:$0xff]
    %v338 = vld [vmem:[#allocation8 + $0x40] sm:$0xff]
    %v339 = vld [vmem:[#allocation8 + $0x48] sm:$0xff]
    %v340 = vld [vmem:[#allocation8 + $0x50] sm:$0xff]
    %v341 = vld [vmem:[#allocation8 + $0x58] sm:$0xff]
    %v342 = vld [vmem:[#allocation8 + $0x60] sm:$0xff]
    %v343 = vld [vmem:[#allocation8 + $0x68] sm:$0xff]
    %v344 = vld [vmem:[#allocation8 + $0x70] sm:$0xff]
    %v345 = vld [vmem:[#allocation8 + $0x78] sm:$0xff]
    %v346 = vld [vmem:[#allocation8 + $0x80] sm:$0xff]
    %v347 = vld [vmem:[#allocation8 + $0x88] sm:$0xff]
    %v348 = vld [vmem:[#allocation8 + $0x90] sm:$0xff]
    %v349 = vld [vmem:[#allocation8 + $0x98] sm:$0xff]
    %v350 = vld [vmem:[#allocation8 + $0xa0] sm:$0xff]
    %v351 = vld [vmem:[#allocation8 + $0xa8] sm:$0xff]
    %v352 = vld [vmem:[#allocation8 + $0xb0] sm:$0xff]
    %v353 = vld [vmem:[#allocation8 + $0xb8] sm:$0xff]
    %v354 = vld [vmem:[#allocation8 + $0xc0] sm:$0xff]
    %v355 = vld [vmem:[#allocation8 + $0xc8] sm:$0xff]
    %v356 = vld [vmem:[#allocation8 + $0xd0] sm:$0xff]
    %v357 = vld [vmem:[#allocation8 + $0xd8] sm:$0xff]
    %v358 = vld [vmem:[#allocation8 + $0xe0] sm:$0xff]
    %v359 = vld [vmem:[#allocation8 + $0xe8] sm:$0xff]
    %v360 = vld [vmem:[#allocation8 + $0xf0] sm:$0xff]
    %v361 = vld [vmem:[#allocation8 + $0xf8] sm:$0xff]
    %v362 = vld [vmem:[#allocation8 + $0x100] sm:$0xff]
    %v363 = vld [vmem:[#allocation8 + $0x108] sm:$0xff]
    %v364 = vld [vmem:[#allocation8 + $0x110] sm:$0xff]
    %v365 = vld [vmem:[#allocation8 + $0x118] sm:$0xff]
    %v366 = vld [vmem:[#allocation8 + $0x120] sm:$0xff]
    %v367 = vld [vmem:[#allocation8 + $0x128] sm:$0xff]
    %v368 = vld [vmem:[#allocation8 + $0x130] sm:$0xff]
    %v369 = vld [vmem:[#allocation8 + $0x138] sm:$0xff]
    %v370 = vld [vmem:[#allocation8 + $0x140] sm:$0xff]
    %v371 = vld [vmem:[#allocation8 + $0x148] sm:$0xff]
    %v372 = vld [vmem:[#allocation8 + $0x150] sm:$0xff]
    %v373 = vld [vmem:[#allocation8 + $0x158] sm:$0xff]
    %v374 = vld [vmem:[#allocation8 + $0x160] sm:$0xff]
    %v375 = vld [vmem:[#allocation8 + $0x168] sm:$0xff]
    %v376 = vld [vmem:[#allocation8 + $0x170] sm:$0xff]
    %v377 = vld [vmem:[#allocation8 + $0x178] sm:$0xff]
    %v378 = vld [vmem:[#allocation8 + $0x180] sm:$0xff]
    %v379 = vld [vmem:[#allocation8 + $0x188] sm:$0xff]
    %v380 = vld [vmem:[#allocation8 + $0x190] sm:$0xff]
    %v381 = vld [vmem:[#allocation8 + $0x198] sm:$0xff]
    %v382 = vld [vmem:[#allocation8 + $0x1a0] sm:$0xff]
    %v383 = vld [vmem:[#allocation8 + $0x1a8] sm:$0xff]
    %v384 = vld [vmem:[#allocation8 + $0x1b0] sm:$0xff]
    %v385 = vld [vmem:[#allocation8 + $0x1b8] sm:$0xff]
    %v386 = vld [vmem:[#allocation8 + $0x1c0] sm:$0xff]
    %v387 = vld [vmem:[#allocation8 + $0x1c8] sm:$0xff]
    %v388 = vld [vmem:[#allocation8 + $0x1d0] sm:$0xff]
    %v389 = vld [vmem:[#allocation8 + $0x1d8] sm:$0xff]
    %v390 = vld [vmem:[#allocation8 + $0x1e0] sm:$0xff]
    %v391 = vld [vmem:[#allocation8 + $0x1e8] sm:$0xff]
    %v392 = vld [vmem:[#allocation8 + $0x1f0] sm:$0xff]
    %v393 = vld [vmem:[#allocation8 + $0x1f8] sm:$0xff]
    %v394 = vld [vmem:[%s6] sm:$0xf]
    %v396 = vlaneseq
    %v397 = vshrl.u32 %v396, 7
    %v398 = vsub.s32 0, %v397
    %v399 = vrot.slane %v394, %v398
    %v400 = vlaneseq
    %v401 = vshrl.u32 %v400, 7
    %v402 = vsub.s32 1, %v401
    %v403 = vrot.slane %v394, %v402
    %v404 = vlaneseq
    %v405 = vshrl.u32 %v404, 7
    %v406 = vsub.s32 2, %v405
    %v407 = vrot.slane %v394, %v406
    %v408 = vlaneseq
    %v409 = vshrl.u32 %v408, 7
    %v410 = vsub.s32 3, %v409
    %v411 = vrot.slane %v394, %v410
    %416 = vmatprep.subr.mxu0 %v331
    %417 = vmatpush1.msra.mxu0 %v330
    %418 = vmatprep.subr.mxu0 %v335
    %419 = vmatpush1.msra.mxu0 %v334
    %420 = vmatprep.subr.mxu0 %v339
    %421 = vmatpush1.msra.mxu0 %v338
    %422 = vmatprep.subr.mxu0 %v343
    %423 = vmatpush1.msra.mxu0 %v342
    %424 = vmatprep.subr.mxu0 %v347
    %425 = vmatpush1.msra.mxu0 %v346
    %426 = vmatprep.subr.mxu0 %v351
    %427 = vmatpush1.msra.mxu0 %v350
    %428 = vmatprep.subr.mxu0 %v355
    %429 = vmatpush1.msra.mxu0 %v354
    %430 = vmatprep.subr.mxu0 %v359
    %431 = vmatpush1.msra.mxu0 %v358
    %432 = vmatprep.subr.mxu0 %v363
    %433 = vmatpush1.msra.mxu0 %v362
    %434 = vmatprep.subr.mxu0 %v367
    %435 = vmatpush1.msra.mxu0 %v366
    %436 = vmatprep.subr.mxu0 %v371
    %437 = vmatpush1.msra.mxu0 %v370
    %438 = vmatprep.subr.mxu0 %v375
    %439 = vmatpush1.msra.mxu0 %v374
    %440 = vmatprep.subr.mxu0 %v379
    %441 = vmatpush1.msra.mxu0 %v378
    %442 = vmatprep.subr.mxu0 %v383
    %443 = vmatpush1.msra.mxu0 %v382
    %444 = vmatprep.subr.mxu0 %v387
    %445 = vmatpush1.msra.mxu0 %v386
    %446 = vmatprep.subr.mxu0 %v391
    %447 = vmatpush1.msra.mxu0 %v390
    %448 = vmatprep.subr.mxu0 0.0
    %449 = vmatpush1.msra.mxu0 0.0
    %450 = vmatprep.subr.mxu0 0.0
    %451 = vmatpush1.msra.mxu0 0.0
    %452 = vmatprep.subr.mxu0 0.0
    %453 = vmatpush1.msra.mxu0 0.0
    %454 = vmatprep.subr.mxu0 0.0
    %455 = vmatpush1.msra.mxu0 0.0
    %456 = vmatprep.subr.mxu0 0.0
    %457 = vmatpush1.msra.mxu0 0.0
    %458 = vmatprep.subr.mxu0 0.0
    %459 = vmatpush1.msra.mxu0 0.0
    %460 = vmatprep.subr.mxu0 0.0
    %461 = vmatpush1.msra.mxu0 0.0
    %462 = vmatprep.subr.mxu0 0.0
    %463 = vmatpush1.msra.mxu0 0.0
    %464 = vmatprep.subr.mxu0 0.0
    %465 = vmatpush1.msra.mxu0 0.0
    %466 = vmatprep.subr.mxu0 0.0
    %467 = vmatpush1.msra.mxu0 0.0
    %468 = vmatprep.subr.mxu0 0.0
    %469 = vmatpush1.msra.mxu0 0.0
    %470 = vmatprep.subr.mxu0 0.0
    %471 = vmatpush1.msra.mxu0 0.0
    %472 = vmatprep.subr.mxu0 0.0
    %473 = vmatpush1.msra.mxu0 0.0
    %474 = vmatprep.subr.mxu0 0.0
    %475 = vmatpush1.msra.mxu0 0.0
    %476 = vmatprep.subr.mxu0 0.0
    %477 = vmatpush1.msra.mxu0 0.0
    %478 = vmatprep.subr.mxu0 0.0
    %479 = vmatpush1.msra.mxu0 0.0
    %480 = vmatprep.mubr.f32.mxu0 0.0
    %481 = vmatmul.mubr.f32.gmra.mrb[0].mxu0 %v328
    %v482 = vpop.f32.mrb[0].mxu0
    %v483 = vadd.f32 %v399, %v482
    %v484 = vpop.f32.mrb[0].mxu0
    %v485 = vadd.f32 %v403, %v484
    %486 = vmatprep.mubr.f32.mxu0 0.0
    %487 = vmatmul.mubr.f32.gmra.mrb[0].mxu0 %v329
    %v488 = vpop.f32.mrb[0].mxu0
    %v489 = vadd.f32 %v399, %v488
    %v490 = vpop.f32.mrb[0].mxu0
    %v491 = vadd.f32 %v403, %v490
    %492 = vdwg.mxu0
    %493 = vmatprep.subr.mxu0 %v333
    %494 = vmatpush1.msra.mxu0 %v332
    %495 = vmatprep.subr.mxu0 %v337
    %496 = vmatpush1.msra.mxu0 %v336
    %497 = vmatprep.subr.mxu0 %v341
    %498 = vmatpush1.msra.mxu0 %v340
    %499 = vmatprep.subr.mxu0 %v345
    %500 = vmatpush1.msra.mxu0 %v344
    %501 = vmatprep.subr.mxu0 %v349
    %502 = vmatpush1.msra.mxu0 %v348
    %503 = vmatprep.subr.mxu0 %v353
    %504 = vmatpush1.msra.mxu0 %v352
    %505 = vmatprep.subr.mxu0 %v357
    %506 = vmatpush1.msra.mxu0 %v356
    %507 = vmatprep.subr.mxu0 %v361
    %508 = vmatpush1.msra.mxu0 %v360
    %509 = vmatprep.subr.mxu0 %v365
    %510 = vmatpush1.msra.mxu0 %v364
    %511 = vmatprep.subr.mxu0 %v369
    %512 = vmatpush1.msra.mxu0 %v368
    %513 = vmatprep.subr.mxu0 %v373
    %514 = vmatpush1.msra.mxu0 %v372
    %515 = vmatprep.subr.mxu0 %v377
    %516 = vmatpush1.msra.mxu0 %v376
    %517 = vmatprep.subr.mxu0 %v381
    %518 = vmatpush1.msra.mxu0 %v380
    %519 = vmatprep.subr.mxu0 %v385
    %520 = vmatpush1.msra.mxu0 %v384
    %521 = vmatprep.subr.mxu0 %v389
    %522 = vmatpush1.msra.mxu0 %v388
    %523 = vmatprep.subr.mxu0 %v393
    %524 = vmatpush1.msra.mxu0 %v392
    %525 = vmatprep.subr.mxu0 0.0
    %526 = vmatpush1.msra.mxu0 0.0
    %527 = vmatprep.subr.mxu0 0.0
    %528 = vmatpush1.msra.mxu0 0.0
    %529 = vmatprep.subr.mxu0 0.0
    %530 = vmatpush1.msra.mxu0 0.0
    %531 = vmatprep.subr.mxu0 0.0
    %532 = vmatpush1.msra.mxu0 0.0
    %533 = vmatprep.subr.mxu0 0.0
    %534 = vmatpush1.msra.mxu0 0.0
    %535 = vmatprep.subr.mxu0 0.0
    %536 = vmatpush1.msra.mxu0 0.0
    %537 = vmatprep.subr.mxu0 0.0
    %538 = vmatpush1.msra.mxu0 0.0
    %539 = vmatprep.subr.mxu0 0.0
    %540 = vmatpush1.msra.mxu0 0.0
    %541 = vmatprep.subr.mxu0 0.0
    %542 = vmatpush1.msra.mxu0 0.0
    %543 = vmatprep.subr.mxu0 0.0
    %544 = vmatpush1.msra.mxu0 0.0
    %545 = vmatprep.subr.mxu0 0.0
    %546 = vmatpush1.msra.mxu0 0.0
    %547 = vmatprep.subr.mxu0 0.0
    %548 = vmatpush1.msra.mxu0 0.0
    %549 = vmatprep.subr.mxu0 0.0
    %550 = vmatpush1.msra.mxu0 0.0
    %551 = vmatprep.subr.mxu0 0.0
    %552 = vmatpush1.msra.mxu0 0.0
    %553 = vmatprep.subr.mxu0 0.0
    %554 = vmatpush1.msra.mxu0 0.0
    %555 = vmatprep.subr.mxu0 0.0
    %556 = vmatpush1.msra.mxu0 0.0
    %557 = vmatprep.mubr.f32.mxu0 0.0
    %558 = vmatmul.mubr.f32.gmra.mrb[0].mxu0 %v328
    %v559 = vpop.f32.mrb[0].mxu0
    %v560 = vadd.f32 %v407, %v559
    %v561 = vpop.f32.mrb[0].mxu0
    %v562 = vadd.f32 %v411, %v561
    %563 = vmatprep.mubr.f32.mxu0 0.0
    %564 = vmatmul.mubr.f32.gmra.mrb[0].mxu0 %v329
    %v565 = vpop.f32.mrb[0].mxu0
    %v566 = vadd.f32 %v407, %v565
    %v567 = vpop.f32.mrb[0].mxu0
    %v568 = vadd.f32 %v411, %v567
    %569 = vdwg.mxu0
    %v570 = vld [vmem:[#allocation10] sm:$0xff]
    %v571 = vld [vmem:[#allocation10 + $0x8] sm:$0xff]
    %v572 = vld [vmem:[#allocation10 + $0x10] sm:$0xff]
    %v573 = vld [vmem:[#allocation10 + $0x18] sm:$0xff]
    %v574 = vld [vmem:[#allocation10 + $0x20] sm:$0xff]
    %v575 = vld [vmem:[#allocation10 + $0x28] sm:$0xff]
    %v576 = vld [vmem:[#allocation10 + $0x30] sm:$0xff]
    %v577 = vld [vmem:[#allocation10 + $0x38] sm:$0xff]
    %v578 = vld [vmem:[#allocation10 + $0x40] sm:$0xff]
    %v579 = vld [vmem:[#allocation10 + $0x48] sm:$0xff]
    %v580 = vld [vmem:[#allocation10 + $0x50] sm:$0xff]
    %v581 = vld [vmem:[#allocation10 + $0x58] sm:$0xff]
    %v582 = vld [vmem:[#allocation10 + $0x60] sm:$0xff]
    %v583 = vld [vmem:[#allocation10 + $0x68] sm:$0xff]
    %v584 = vld [vmem:[#allocation10 + $0x70] sm:$0xff]
    %v585 = vld [vmem:[#allocation10 + $0x78] sm:$0xff]
    %v586 = vld [vmem:[#allocation10 + $0x80] sm:$0xff]
    %v587 = vld [vmem:[#allocation10 + $0x88] sm:$0xff]
    %v588 = vld [vmem:[#allocation10 + $0x90] sm:$0xff]
    %v589 = vld [vmem:[#allocation10 + $0x98] sm:$0xff]
    %v590 = vld [vmem:[#allocation10 + $0xa0] sm:$0xff]
    %v591 = vld [vmem:[#allocation10 + $0xa8] sm:$0xff]
    %v592 = vld [vmem:[#allocation10 + $0xb0] sm:$0xff]
    %v593 = vld [vmem:[#allocation10 + $0xb8] sm:$0xff]
    %v594 = vld [vmem:[#allocation10 + $0xc0] sm:$0xff]
    %v595 = vld [vmem:[#allocation10 + $0xc8] sm:$0xff]
    %v596 = vld [vmem:[#allocation10 + $0xd0] sm:$0xff]
    %v597 = vld [vmem:[#allocation10 + $0xd8] sm:$0xff]
    %v598 = vld [vmem:[#allocation10 + $0xe0] sm:$0xff]
    %v599 = vld [vmem:[#allocation10 + $0xe8] sm:$0xff]
    %v600 = vld [vmem:[#allocation10 + $0xf0] sm:$0xff]
    %v601 = vld [vmem:[#allocation10 + $0xf8] sm:$0xff]
    %v602 = vld [vmem:[#allocation10 + $0x100] sm:$0xff]
    %v603 = vld [vmem:[#allocation10 + $0x108] sm:$0xff]
    %v604 = vld [vmem:[#allocation10 + $0x110] sm:$0xff]
    %v605 = vld [vmem:[#allocation10 + $0x118] sm:$0xff]
    %v606 = vld [vmem:[#allocation10 + $0x120] sm:$0xff]
    %v607 = vld [vmem:[#allocation10 + $0x128] sm:$0xff]
    %v608 = vld [vmem:[#allocation10 + $0x130] sm:$0xff]
    %v609 = vld [vmem:[#allocation10 + $0x138] sm:$0xff]
    %v610 = vld [vmem:[#allocation10 + $0x140] sm:$0xff]
    %v611 = vld [vmem:[#allocation10 + $0x148] sm:$0xff]
    %v612 = vld [vmem:[#allocation10 + $0x150] sm:$0xff]
    %v613 = vld [vmem:[#allocation10 + $0x158] sm:$0xff]
    %v614 = vld [vmem:[#allocation10 + $0x160] sm:$0xff]
    %v615 = vld [vmem:[#allocation10 + $0x168] sm:$0xff]
    %v616 = vld [vmem:[#allocation10 + $0x170] sm:$0xff]
    %v617 = vld [vmem:[#allocation10 + $0x178] sm:$0xff]
    %v618 = vld [vmem:[#allocation10 + $0x180] sm:$0xff]
    %v619 = vld [vmem:[#allocation10 + $0x188] sm:$0xff]
    %v620 = vld [vmem:[#allocation10 + $0x190] sm:$0xff]
    %v621 = vld [vmem:[#allocation10 + $0x198] sm:$0xff]
    %v622 = vld [vmem:[#allocation10 + $0x1a0] sm:$0xff]
    %v623 = vld [vmem:[#allocation10 + $0x1a8] sm:$0xff]
    %v624 = vld [vmem:[#allocation10 + $0x1b0] sm:$0xff]
    %v625 = vld [vmem:[#allocation10 + $0x1b8] sm:$0xff]
    %v626 = vld [vmem:[#allocation10 + $0x1c0] sm:$0xff]
    %v627 = vld [vmem:[#allocation10 + $0x1c8] sm:$0xff]
    %v628 = vld [vmem:[#allocation10 + $0x1d0] sm:$0xff]
    %v629 = vld [vmem:[#allocation10 + $0x1d8] sm:$0xff]
    %v630 = vld [vmem:[#allocation10 + $0x1e0] sm:$0xff]
    %v631 = vld [vmem:[#allocation10 + $0x1e8] sm:$0xff]
    %v632 = vld [vmem:[#allocation10 + $0x1f0] sm:$0xff]
    %v633 = vld [vmem:[#allocation10 + $0x1f8] sm:$0xff]
    %634 = vmatprep.subr.mxu0 %v571
    %635 = vmatpush1.msra.mxu0 %v570
    %636 = vmatprep.subr.mxu0 %v575
    %637 = vmatpush1.msra.mxu0 %v574
    %638 = vmatprep.subr.mxu0 %v579
    %639 = vmatpush1.msra.mxu0 %v578
    %640 = vmatprep.subr.mxu0 %v583
    %641 = vmatpush1.msra.mxu0 %v582
    %642 = vmatprep.subr.mxu0 %v587
    %643 = vmatpush1.msra.mxu0 %v586
    %644 = vmatprep.subr.mxu0 %v591
    %645 = vmatpush1.msra.mxu0 %v590
    %646 = vmatprep.subr.mxu0 %v595
    %647 = vmatpush1.msra.mxu0 %v594
    %648 = vmatprep.subr.mxu0 %v599
    %649 = vmatpush1.msra.mxu0 %v598
    %650 = vmatprep.subr.mxu0 %v603
    %651 = vmatpush1.msra.mxu0 %v602
    %652 = vmatprep.subr.mxu0 %v607
    %653 = vmatpush1.msra.mxu0 %v606
    %654 = vmatprep.subr.mxu0 %v611
    %655 = vmatpush1.msra.mxu0 %v610
    %656 = vmatprep.subr.mxu0 %v615
    %657 = vmatpush1.msra.mxu0 %v614
    %658 = vmatprep.subr.mxu0 %v619
    %659 = vmatpush1.msra.mxu0 %v618
    %660 = vmatprep.subr.mxu0 %v623
    %661 = vmatpush1.msra.mxu0 %v622
    %662 = vmatprep.subr.mxu0 %v627
    %663 = vmatpush1.msra.mxu0 %v626
    %664 = vmatprep.subr.mxu0 %v631
    %665 = vmatpush1.msra.mxu0 %v630
    %666 = vmatprep.subr.mxu0 0.0
    %667 = vmatpush1.msra.mxu0 0.0
    %668 = vmatprep.subr.mxu0 0.0
    %669 = vmatpush1.msra.mxu0 0.0
    %670 = vmatprep.subr.mxu0 0.0
    %671 = vmatpush1.msra.mxu0 0.0
    %672 = vmatprep.subr.mxu0 0.0
    %673 = vmatpush1.msra.mxu0 0.0
    %674 = vmatprep.subr.mxu0 0.0
    %675 = vmatpush1.msra.mxu0 0.0
    %676 = vmatprep.subr.mxu0 0.0
    %677 = vmatpush1.msra.mxu0 0.0
    %678 = vmatprep.subr.mxu0 0.0
    %679 = vmatpush1.msra.mxu0 0.0
    %680 = vmatprep.subr.mxu0 0.0
    %681 = vmatpush1.msra.mxu0 0.0
    %682 = vmatprep.subr.mxu0 0.0
    %683 = vmatpush1.msra.mxu0 0.0
    %684 = vmatprep.subr.mxu0 0.0
    %685 = vmatpush1.msra.mxu0 0.0
    %686 = vmatprep.subr.mxu0 0.0
    %687 = vmatpush1.msra.mxu0 0.0
    %688 = vmatprep.subr.mxu0 0.0
    %689 = vmatpush1.msra.mxu0 0.0
    %690 = vmatprep.subr.mxu0 0.0
    %691 = vmatpush1.msra.mxu0 0.0
    %692 = vmatprep.subr.mxu0 0.0
    %693 = vmatpush1.msra.mxu0 0.0
    %694 = vmatprep.subr.mxu0 0.0
    %695 = vmatpush1.msra.mxu0 0.0
    %696 = vmatprep.subr.mxu0 0.0
    %697 = vmatpush1.msra.mxu0 0.0
    %698 = vmatprep.mubr.f32.mxu0 0.0
    %699 = vmatmul.mubr.f32.gmra.mrb[0].mxu0 0.0
    %v700 = vpop.f32.mrb[0].mxu0
    %v701 = vadd.f32 0.0, %v700
    %v702 = vpop.f32.mrb[0].mxu0
    %v703 = vadd.f32 0.0, %v702
    %704 = vdwg.mxu0
    %705 = vmatprep.subr.mxu0 %v573
    %706 = vmatpush1.msra.mxu0 %v572
    %707 = vmatprep.subr.mxu0 %v577
    %708 = vmatpush1.msra.mxu0 %v576
    %709 = vmatprep.subr.mxu0 %v581
    %710 = vmatpush1.msra.mxu0 %v580
    %711 = vmatprep.subr.mxu0 %v585
    %712 = vmatpush1.msra.mxu0 %v584
    %713 = vmatprep.subr.mxu0 %v589
    %714 = vmatpush1.msra.mxu0 %v588
    %715 = vmatprep.subr.mxu0 %v593
    %716 = vmatpush1.msra.mxu0 %v592
    %717 = vmatprep.subr.mxu0 %v597
    %718 = vmatpush1.msra.mxu0 %v596
    %719 = vmatprep.subr.mxu0 %v601
    %720 = vmatpush1.msra.mxu0 %v600
    %721 = vmatprep.subr.mxu0 %v605
    %722 = vmatpush1.msra.mxu0 %v604
    %723 = vmatprep.subr.mxu0 %v609
    %724 = vmatpush1.msra.mxu0 %v608
    %725 = vmatprep.subr.mxu0 %v613
    %726 = vmatpush1.msra.mxu0 %v612
    %727 = vmatprep.subr.mxu0 %v617
    %728 = vmatpush1.msra.mxu0 %v616
    %729 = vmatprep.subr.mxu0 %v621
    %730 = vmatpush1.msra.mxu0 %v620
    %731 = vmatprep.subr.mxu0 %v625
    %732 = vmatpush1.msra.mxu0 %v624
    %733 = vmatprep.subr.mxu0 %v629
    %734 = vmatpush1.msra.mxu0 %v628
    %735 = vmatprep.subr.mxu0 %v633
    %736 = vmatpush1.msra.mxu0 %v632
    %737 = vmatprep.subr.mxu0 0.0
    %738 = vmatpush1.msra.mxu0 0.0
    %739 = vmatprep.subr.mxu0 0.0
    %740 = vmatpush1.msra.mxu0 0.0
    %741 = vmatprep.subr.mxu0 0.0
    %742 = vmatpush1.msra.mxu0 0.0
    %743 = vmatprep.subr.mxu0 0.0
    %744 = vmatpush1.msra.mxu0 0.0
    %745 = vmatprep.subr.mxu0 0.0
    %746 = vmatpush1.msra.mxu0 0.0
    %747 = vmatprep.subr.mxu0 0.0
    %748 = vmatpush1.msra.mxu0 0.0
    %749 = vmatprep.subr.mxu0 0.0
    %750 = vmatpush1.msra.mxu0 0.0
    %751 = vmatprep.subr.mxu0 0.0
    %752 = vmatpush1.msra.mxu0 0.0
    %753 = vmatprep.subr.mxu0 0.0
    %754 = vmatpush1.msra.mxu0 0.0
    %755 = vmatprep.subr.mxu0 0.0
    %756 = vmatpush1.msra.mxu0 0.0
    %757 = vmatprep.subr.mxu0 0.0
    %758 = vmatpush1.msra.mxu0 0.0
    %759 = vmatprep.subr.mxu0 0.0
    %760 = vmatpush1.msra.mxu0 0.0
    %761 = vmatprep.subr.mxu0 0.0
    %762 = vmatpush1.msra.mxu0 0.0
    %763 = vmatprep.subr.mxu0 0.0
    %764 = vmatpush1.msra.mxu0 0.0
    %765 = vmatprep.subr.mxu0 0.0
    %766 = vmatpush1.msra.mxu0 0.0
    %767 = vmatprep.subr.mxu0 0.0
    %768 = vmatpush1.msra.mxu0 0.0
    %769 = vmatprep.mubr.f32.mxu0 0.0
    %770 = vmatmul.mubr.f32.gmra.mrb[0].mxu0 0.0
    %v771 = vpop.f32.mrb[0].mxu0
    %v772 = vadd.f32 0.0, %v771
    %v773 = vpop.f32.mrb[0].mxu0
    %v774 = vadd.f32 0.0, %v773
    %775 = vdwg.mxu0
    %v776 = vadd.f32 %v483, %v701
    %v777 = vadd.f32 %v485, %v703
    %v778 = vadd.f32 %v560, %v772
    %v779 = vadd.f32 %v562, %v774
    %v780 = vxor.u32 %v776, 2147483648
    %v781 = vmul.f32 %v780, 1.442695
    %v782 = vpow.pop %v781
    %v783 = vadd.f32 %v782, 1.0
    %v784 = vrcp.pop %v783
    %v785 = vmul.f32 1.0, %v784
    %v786 = vxor.u32 %v777, 2147483648
    %v787 = vmul.f32 %v786, 1.442695
    %v788 = vpow.pop %v787
    %v789 = vadd.f32 %v788, 1.0
    %v790 = vrcp.pop %v789
    %v791 = vmul.f32 1.0, %v790
    %v792 = vtanh.pop %v778
    %v793 = vxor.u32 %v779, 2147483648
    %v794 = vmul.f32 %v793, 1.442695
    %v795 = vpow.pop %v794
    %v796 = vadd.f32 %v795, 1.0
    %v797 = vrcp.pop %v796
    %v798 = vmul.f32 1.0, %v797
    %v799 = vmul.f32 %v791, 0.0
    %v800 = vmul.f32 %v785, %v792
    %v801 = vadd.f32 %v799, %v800
    %v802 = vtanh.pop %v801
    %v803 = vmul.f32 %v798, %v802
    %804 = vmatprep.subr.mxu0 %v571
    %805 = vmatpush1.msra.mxu0 %v570
    %806 = vmatprep.subr.mxu0 %v575
    %807 = vmatpush1.msra.mxu0 %v574
    %808 = vmatprep.subr.mxu0 %v579
    %809 = vmatpush1.msra.mxu0 %v578
    %810 = vmatprep.subr.mxu0 %v583
    %811 = vmatpush1.msra.mxu0 %v582
    %812 = vmatprep.subr.mxu0 %v587
    %813 = vmatpush1.msra.mxu0 %v586
    %814 = vmatprep.subr.mxu0 %v591
    %815 = vmatpush1.msra.mxu0 %v590
    %816 = vmatprep.subr.mxu0 %v595
    %817 = vmatpush1.msra.mxu0 %v594
    %818 = vmatprep.subr.mxu0 %v599
    %819 = vmatpush1.msra.mxu0 %v598
    %820 = vmatprep.subr.mxu0 %v603
    %821 = vmatpush1.msra.mxu0 %v602
    %822 = vmatprep.subr.mxu0 %v607
    %823 = vmatpush1.msra.mxu0 %v606
    %824 = vmatprep.subr.mxu0 %v611
    %825 = vmatpush1.msra.mxu0 %v610
    %826 = vmatprep.subr.mxu0 %v615
    %827 = vmatpush1.msra.mxu0 %v614
    %828 = vmatprep.subr.mxu0 %v619
    %829 = vmatpush1.msra.mxu0 %v618
    %830 = vmatprep.subr.mxu0 %v623
    %831 = vmatpush1.msra.mxu0 %v622
    %832 = vmatprep.subr.mxu0 %v627
    %833 = vmatpush1.msra.mxu0 %v626
    %834 = vmatprep.subr.mxu0 %v631
    %835 = vmatpush1.msra.mxu0 %v630
    %836 = vmatprep.subr.mxu0 0.0
    %837 = vmatpush1.msra.mxu0 0.0
    %838 = vmatprep.subr.mxu0 0.0
    %839 = vmatpush1.msra.mxu0 0.0
    %840 = vmatprep.subr.mxu0 0.0
    %841 = vmatpush1.msra.mxu0 0.0
    %842 = vmatprep.subr.mxu0 0.0
    %843 = vmatpush1.msra.mxu0 0.0
    %844 = vmatprep.subr.mxu0 0.0
    %845 = vmatpush1.msra.mxu0 0.0
    %846 = vmatprep.subr.mxu0 0.0
    %847 = vmatpush1.msra.mxu0 0.0
    %848 = vmatprep.subr.mxu0 0.0
    %849 = vmatpush1.msra.mxu0 0.0
    %850 = vmatprep.subr.mxu0 0.0
    %851 = vmatpush1.msra.mxu0 0.0
    %852 = vmatprep.subr.mxu0 0.0
    %853 = vmatpush1.msra.mxu0 0.0
    %854 = vmatprep.subr.mxu0 0.0
    %855 = vmatpush1.msra.mxu0 0.0
    %856 = vmatprep.subr.mxu0 0.0
    %857 = vmatpush1.msra.mxu0 0.0
    %858 = vmatprep.subr.mxu0 0.0
    %859 = vmatpush1.msra.mxu0 0.0
    %860 = vmatprep.subr.mxu0 0.0
    %861 = vmatpush1.msra.mxu0 0.0
    %862 = vmatprep.subr.mxu0 0.0
    %863 = vmatpush1.msra.mxu0 0.0
    %864 = vmatprep.subr.mxu0 0.0
    %865 = vmatpush1.msra.mxu0 0.0
    %866 = vmatprep.subr.mxu0 0.0
    %867 = vmatpush1.msra.mxu0 0.0
    %868 = vmatprep.mubr.f32.mxu0 0.0
    %869 = vmatmul.mubr.f32.gmra.mrb[0].mxu0 %v803
    %v870 = vpop.f32.mrb[0].mxu0
    %v871 = vadd.f32 0.0, %v870
    %v872 = vpop.f32.mrb[0].mxu0
    %v873 = vadd.f32 0.0, %v872
    %874 = vdwg.mxu0
    %875 = vmatprep.subr.mxu0 %v573
    %876 = vmatpush1.msra.mxu0 %v572
    %877 = vmatprep.subr.mxu0 %v577
    %878 = vmatpush1.msra.mxu0 %v576
    %879 = vmatprep.subr.mxu0 %v581
    %880 = vmatpush1.msra.mxu0 %v580
    %881 = vmatprep.subr.mxu0 %v585
    %882 = vmatpush1.msra.mxu0 %v584
    %883 = vmatprep.subr.mxu0 %v589
    %884 = vmatpush1.msra.mxu0 %v588
    %885 = vmatprep.subr.mxu0 %v593
    %886 = vmatpush1.msra.mxu0 %v592
    %887 = vmatprep.subr.mxu0 %v597
    %888 = vmatpush1.msra.mxu0 %v596
    %889 = vmatprep.subr.mxu0 %v601
    %890 = vmatpush1.msra.mxu0 %v600
    %891 = vmatprep.subr.mxu0 %v605
    %892 = vmatpush1.msra.mxu0 %v604
    %893 = vmatprep.subr.mxu0 %v609
    %894 = vmatpush1.msra.mxu0 %v608
    %895 = vmatprep.subr.mxu0 %v613
    %896 = vmatpush1.msra.mxu0 %v612
    %897 = vmatprep.subr.mxu0 %v617
    %898 = vmatpush1.msra.mxu0 %v616
    %899 = vmatprep.subr.mxu0 %v621
    %900 = vmatpush1.msra.mxu0 %v620
    %901 = vmatprep.subr.mxu0 %v625
    %902 = vmatpush1.msra.mxu0 %v624
    %903 = vmatprep.subr.mxu0 %v629
    %904 = vmatpush1.msra.mxu0 %v628
    %905 = vmatprep.subr.mxu0 %v633
    %906 = vmatpush1.msra.mxu0 %v632
    %907 = vmatprep.subr.mxu0 0.0
    %908 = vmatpush1.msra.mxu0 0.0
    %909 = vmatprep.subr.mxu0 0.0
    %910 = vmatpush1.msra.mxu0 0.0
    %911 = vmatprep.subr.mxu0 0.0
    %912 = vmatpush1.msra.mxu0 0.0
    %913 = vmatprep.subr.mxu0 0.0
    %914 = vmatpush1.msra.mxu0 0.0
    %915 = vmatprep.subr.mxu0 0.0
    %916 = vmatpush1.msra.mxu0 0.0
    %917 = vmatprep.subr.mxu0 0.0
    %918 = vmatpush1.msra.mxu0 0.0
    %919 = vmatprep.subr.mxu0 0.0
    %920 = vmatpush1.msra.mxu0 0.0
    %921 = vmatprep.subr.mxu0 0.0
    %922 = vmatpush1.msra.mxu0 0.0
    %923 = vmatprep.subr.mxu0 0.0
    %924 = vmatpush1.msra.mxu0 0.0
    %925 = vmatprep.subr.mxu0 0.0
    %926 = vmatpush1.msra.mxu0 0.0
    %927 = vmatprep.subr.mxu0 0.0
    %928 = vmatpush1.msra.mxu0 0.0
    %929 = vmatprep.subr.mxu0 0.0
    %930 = vmatpush1.msra.mxu0 0.0
    %931 = vmatprep.subr.mxu0 0.0
    %932 = vmatpush1.msra.mxu0 0.0
    %933 = vmatprep.subr.mxu0 0.0
    %934 = vmatpush1.msra.mxu0 0.0
    %935 = vmatprep.subr.mxu0 0.0
    %936 = vmatpush1.msra.mxu0 0.0
    %937 = vmatprep.subr.mxu0 0.0
    %938 = vmatpush1.msra.mxu0 0.0
    %939 = vmatprep.mubr.f32.mxu0 0.0
    %940 = vmatmul.mubr.f32.gmra.mrb[0].mxu0 %v803
    %v941 = vpop.f32.mrb[0].mxu0
    %v942 = vadd.f32 0.0, %v941
    %v943 = vpop.f32.mrb[0].mxu0
    %v944 = vadd.f32 0.0, %v943
    %945 = vdwg.mxu0
    %v950 = vrot.slane %v871, 6
    %v951 = vrot.slane %v873, 6
    %v952 = vrot.slane %v942, 6
    %v953 = vrot.slane %v944, 6
    %v958 = vadd.f32 %v483, %v950
    %v959 = vadd.f32 %v485, %v951
    %v960 = vadd.f32 %v560, %v952
    %v961 = vadd.f32 %v562, %v953
    %v962 = vxor.u32 %v958, 2147483648
    %v963 = vmul.f32 %v962, 1.442695
    %v964 = vpow.pop %v963
    %v965 = vadd.f32 %v964, 1.0
    %v966 = vrcp.pop %v965
    %v967 = vmul.f32 1.0, %v966
    %v968 = vxor.u32 %v959, 2147483648
    %v969 = vmul.f32 %v968, 1.442695
    %v970 = vpow.pop %v969
    %v971 = vadd.f32 %v970, 1.0
    %v972 = vrcp.pop %v971
    %v973 = vmul.f32 1.0, %v972
    %v974 = vtanh.pop %v960
    %v975 = vxor.u32 %v961, 2147483648
    %v976 = vmul.f32 %v975, 1.442695
    %v977 = vpow.pop %v976
    %v978 = vadd.f32 %v977, 1.0
    %v979 = vrcp.pop %v978
    %v980 = vmul.f32 1.0, %v979
    %v982 = vrot.slane %v801, 6
    %v984 = vmul.f32 %v973, %v982
    %v985 = vmul.f32 %v967, %v974
    %v986 = vadd.f32 %v984, %v985
    %v987 = vtanh.pop %v986
    %v988 = vmul.f32 %v980, %v987
    %v990 = vrot.slane %v988, 2
    %992 = vmatprep.subr.mxu0 %v571
    %993 = vmatpush1.msra.mxu0 %v570
    %994 = vmatprep.subr.mxu0 %v575
    %995 = vmatpush1.msra.mxu0 %v574
    %996 = vmatprep.subr.mxu0 %v579
    %997 = vmatpush1.msra.mxu0 %v578
    %998 = vmatprep.subr.mxu0 %v583
    %999 = vmatpush1.msra.mxu0 %v582
    %1000 = vmatprep.subr.mxu0 %v587
    %1001 = vmatpush1.msra.mxu0 %v586
    %1002 = vmatprep.subr.mxu0 %v591
    %1003 = vmatpush1.msra.mxu0 %v590
    %1004 = vmatprep.subr.mxu0 %v595
    %1005 = vmatpush1.msra.mxu0 %v594
    %1006 = vmatprep.subr.mxu0 %v599
    %1007 = vmatpush1.msra.mxu0 %v598
    %1008 = vmatprep.subr.mxu0 %v603
    %1009 = vmatpush1.msra.mxu0 %v602
    %1010 = vmatprep.subr.mxu0 %v607
    %1011 = vmatpush1.msra.mxu0 %v606
    %1012 = vmatprep.subr.mxu0 %v611
    %1013 = vmatpush1.msra.mxu0 %v610
    %1014 = vmatprep.subr.mxu0 %v615
    %1015 = vmatpush1.msra.mxu0 %v614
    %1016 = vmatprep.subr.mxu0 %v619
    %1017 = vmatpush1.msra.mxu0 %v618
    %1018 = vmatprep.subr.mxu0 %v623
    %1019 = vmatpush1.msra.mxu0 %v622
    %1020 = vmatprep.subr.mxu0 %v627
    %1021 = vmatpush1.msra.mxu0 %v626
    %1022 = vmatprep.subr.mxu0 %v631
    %1023 = vmatpush1.msra.mxu0 %v630
    %1024 = vmatprep.subr.mxu0 0.0
    %1025 = vmatpush1.msra.mxu0 0.0
    %1026 = vmatprep.subr.mxu0 0.0
    %1027 = vmatpush1.msra.mxu0 0.0
    %1028 = vmatprep.subr.mxu0 0.0
    %1029 = vmatpush1.msra.mxu0 0.0
    %1030 = vmatprep.subr.mxu0 0.0
    %1031 = vmatpush1.msra.mxu0 0.0
    %1032 = vmatprep.subr.mxu0 0.0
    %1033 = vmatpush1.msra.mxu0 0.0
    %1034 = vmatprep.subr.mxu0 0.0
    %1035 = vmatpush1.msra.mxu0 0.0
    %1036 = vmatprep.subr.mxu0 0.0
    %1037 = vmatpush1.msra.mxu0 0.0
    %1038 = vmatprep.subr.mxu0 0.0
    %1039 = vmatpush1.msra.mxu0 0.0
    %1040 = vmatprep.subr.mxu0 0.0
    %1041 = vmatpush1.msra.mxu0 0.0
    %1042 = vmatprep.subr.mxu0 0.0
    %1043 = vmatpush1.msra.mxu0 0.0
    %1044 = vmatprep.subr.mxu0 0.0
    %1045 = vmatpush1.msra.mxu0 0.0
    %1046 = vmatprep.subr.mxu0 0.0
    %1047 = vmatpush1.msra.mxu0 0.0
    %1048 = vmatprep.subr.mxu0 0.0
    %1049 = vmatpush1.msra.mxu0 0.0
    %1050 = vmatprep.subr.mxu0 0.0
    %1051 = vmatpush1.msra.mxu0 0.0
    %1052 = vmatprep.subr.mxu0 0.0
    %1053 = vmatpush1.msra.mxu0 0.0
    %1054 = vmatprep.subr.mxu0 0.0
    %1055 = vmatpush1.msra.mxu0 0.0
    %1056 = vmatprep.mubr.f32.mxu0 0.0
    %1057 = vmatmul.mubr.f32.gmra.mrb[0].mxu0 %v990
    %v1058 = vpop.f32.mrb[0].mxu0
    %v1059 = vadd.f32 0.0, %v1058
    %v1060 = vpop.f32.mrb[0].mxu0
    %v1061 = vadd.f32 0.0, %v1060
    %1062 = vdwg.mxu0
    %1063 = vmatprep.subr.mxu0 %v573
    %1064 = vmatpush1.msra.mxu0 %v572
    %1065 = vmatprep.subr.mxu0 %v577
    %1066 = vmatpush1.msra.mxu0 %v576
    %1067 = vmatprep.subr.mxu0 %v581
    %1068 = vmatpush1.msra.mxu0 %v580
    %1069 = vmatprep.subr.mxu0 %v585
    %1070 = vmatpush1.msra.mxu0 %v584
    %1071 = vmatprep.subr.mxu0 %v589
    %1072 = vmatpush1.msra.mxu0 %v588
    %1073 = vmatprep.subr.mxu0 %v593
    %1074 = vmatpush1.msra.mxu0 %v592
    %1075 = vmatprep.subr.mxu0 %v597
    %1076 = vmatpush1.msra.mxu0 %v596
    %1077 = vmatprep.subr.mxu0 %v601
    %1078 = vmatpush1.msra.mxu0 %v600
    %1079 = vmatprep.subr.mxu0 %v605
    %1080 = vmatpush1.msra.mxu0 %v604
    %1081 = vmatprep.subr.mxu0 %v609
    %1082 = vmatpush1.msra.mxu0 %v608
    %1083 = vmatprep.subr.mxu0 %v613
    %1084 = vmatpush1.msra.mxu0 %v612
    %1085 = vmatprep.subr.mxu0 %v617
    %1086 = vmatpush1.msra.mxu0 %v616
    %1087 = vmatprep.subr.mxu0 %v621
    %1088 = vmatpush1.msra.mxu0 %v620
    %1089 = vmatprep.subr.mxu0 %v625
    %1090 = vmatpush1.msra.mxu0 %v624
    %1091 = vmatprep.subr.mxu0 %v629
    %1092 = vmatpush1.msra.mxu0 %v628
    %1093 = vmatprep.subr.mxu0 %v633
    %1094 = vmatpush1.msra.mxu0 %v632
    %1095 = vmatprep.subr.mxu0 0.0
    %1096 = vmatpush1.msra.mxu0 0.0
    %1097 = vmatprep.subr.mxu0 0.0
    %1098 = vmatpush1.msra.mxu0 0.0
    %1099 = vmatprep.subr.mxu0 0.0
    %1100 = vmatpush1.msra.mxu0 0.0
    %1101 = vmatprep.subr.mxu0 0.0
    %1102 = vmatpush1.msra.mxu0 0.0
    %1103 = vmatprep.subr.mxu0 0.0
    %1104 = vmatpush1.msra.mxu0 0.0
    %1105 = vmatprep.subr.mxu0 0.0
    %1106 = vmatpush1.msra.mxu0 0.0
    %1107 = vmatprep.subr.mxu0 0.0
    %1108 = vmatpush1.msra.mxu0 0.0
    %1109 = vmatprep.subr.mxu0 0.0
    %1110 = vmatpush1.msra.mxu0 0.0
    %1111 = vmatprep.subr.mxu0 0.0
    %1112 = vmatpush1.msra.mxu0 0.0
    %1113 = vmatprep.subr.mxu0 0.0
    %1114 = vmatpush1.msra.mxu0 0.0
    %1115 = vmatprep.subr.mxu0 0.0
    %1116 = vmatpush1.msra.mxu0 0.0
    %1117 = vmatprep.subr.mxu0 0.0
    %1118 = vmatpush1.msra.mxu0 0.0
    %1119 = vmatprep.subr.mxu0 0.0
    %1120 = vmatpush1.msra.mxu0 0.0
    %1121 = vmatprep.subr.mxu0 0.0
    %1122 = vmatpush1.msra.mxu0 0.0
    %1123 = vmatprep.subr.mxu0 0.0
    %1124 = vmatpush1.msra.mxu0 0.0
    %1125 = vmatprep.subr.mxu0 0.0
    %1126 = vmatpush1.msra.mxu0 0.0
    %1127 = vmatprep.mubr.f32.mxu0 0.0
    %1128 = vmatmul.mubr.f32.gmra.mrb[0].mxu0 %v990
    %v1129 = vpop.f32.mrb[0].mxu0
    %v1130 = vadd.f32 0.0, %v1129
    %v1131 = vpop.f32.mrb[0].mxu0
    %v1132 = vadd.f32 0.0, %v1131
    %1133 = vdwg.mxu0
    %v1138 = vrot.slane %v1059, 4
    %v1139 = vrot.slane %v1061, 4
    %v1140 = vrot.slane %v1130, 4
    %v1141 = vrot.slane %v1132, 4
    %v1146 = vadd.f32 %v483, %v1138
    %v1147 = vadd.f32 %v485, %v1139
    %v1148 = vadd.f32 %v560, %v1140
    %v1149 = vadd.f32 %v562, %v1141
    %v1150 = vxor.u32 %v1146, 2147483648
    %v1151 = vmul.f32 %v1150, 1.442695
    %v1152 = vpow.pop %v1151
    %v1153 = vadd.f32 %v1152, 1.0
    %v1154 = vrcp.pop %v1153
    %v1155 = vmul.f32 1.0, %v1154
    %v1156 = vxor.u32 %v1147, 2147483648
    %v1157 = vmul.f32 %v1156, 1.442695
    %v1158 = vpow.pop %v1157
    %v1159 = vadd.f32 %v1158, 1.0
    %v1160 = vrcp.pop %v1159
    %v1161 = vmul.f32 1.0, %v1160
    %v1162 = vtanh.pop %v1148
    %v1163 = vxor.u32 %v1149, 2147483648
    %v1164 = vmul.f32 %v1163, 1.442695
    %v1165 = vpow.pop %v1164
    %v1166 = vadd.f32 %v1165, 1.0
    %v1167 = vrcp.pop %v1166
    %v1168 = vmul.f32 1.0, %v1167
    %v1170 = vrot.slane %v986, 6
    %v1172 = vmul.f32 %v1161, %v1170
    %v1173 = vmul.f32 %v1155, %v1162
    %v1174 = vadd.f32 %v1172, %v1173
    %v1175 = vtanh.pop %v1174
    %v1176 = vmul.f32 %v1168, %v1175
    %v1178 = vrot.slane %v1176, 4
    %1180 = vmatprep.subr.mxu0 %v571
    %1181 = vmatpush1.msra.mxu0 %v570
    %1182 = vmatprep.subr.mxu0 %v575
    %1183 = vmatpush1.msra.mxu0 %v574
    %1184 = vmatprep.subr.mxu0 %v579
    %1185 = vmatpush1.msra.mxu0 %v578
    %1186 = vmatprep.subr.mxu0 %v583
    %1187 = vmatpush1.msra.mxu0 %v582
    %1188 = vmatprep.subr.mxu0 %v587
    %1189 = vmatpush1.msra.mxu0 %v586
    %1190 = vmatprep.subr.mxu0 %v591
    %1191 = vmatpush1.msra.mxu0 %v590
    %1192 = vmatprep.subr.mxu0 %v595
    %1193 = vmatpush1.msra.mxu0 %v594
    %1194 = vmatprep.subr.mxu0 %v599
    %1195 = vmatpush1.msra.mxu0 %v598
    %1196 = vmatprep.subr.mxu0 %v603
    %1197 = vmatpush1.msra.mxu0 %v602
    %1198 = vmatprep.subr.mxu0 %v607
    %1199 = vmatpush1.msra.mxu0 %v606
    %1200 = vmatprep.subr.mxu0 %v611
    %1201 = vmatpush1.msra.mxu0 %v610
    %1202 = vmatprep.subr.mxu0 %v615
    %1203 = vmatpush1.msra.mxu0 %v614
    %1204 = vmatprep.subr.mxu0 %v619
    %1205 = vmatpush1.msra.mxu0 %v618
    %1206 = vmatprep.subr.mxu0 %v623
    %1207 = vmatpush1.msra.mxu0 %v622
    %1208 = vmatprep.subr.mxu0 %v627
    %1209 = vmatpush1.msra.mxu0 %v626
    %1210 = vmatprep.subr.mxu0 %v631
    %1211 = vmatpush1.msra.mxu0 %v630
    %1212 = vmatprep.subr.mxu0 0.0
    %1213 = vmatpush1.msra.mxu0 0.0
    %1214 = vmatprep.subr.mxu0 0.0
    %1215 = vmatpush1.msra.mxu0 0.0
    %1216 = vmatprep.subr.mxu0 0.0
    %1217 = vmatpush1.msra.mxu0 0.0
    %1218 = vmatprep.subr.mxu0 0.0
    %1219 = vmatpush1.msra.mxu0 0.0
    %1220 = vmatprep.subr.mxu0 0.0
    %1221 = vmatpush1.msra.mxu0 0.0
    %1222 = vmatprep.subr.mxu0 0.0
    %1223 = vmatpush1.msra.mxu0 0.0
    %1224 = vmatprep.subr.mxu0 0.0
    %1225 = vmatpush1.msra.mxu0 0.0
    %1226 = vmatprep.subr.mxu0 0.0
    %1227 = vmatpush1.msra.mxu0 0.0
    %1228 = vmatprep.subr.mxu0 0.0
    %1229 = vmatpush1.msra.mxu0 0.0
    %1230 = vmatprep.subr.mxu0 0.0
    %1231 = vmatpush1.msra.mxu0 0.0
    %1232 = vmatprep.subr.mxu0 0.0
    %1233 = vmatpush1.msra.mxu0 0.0
    %1234 = vmatprep.subr.mxu0 0.0
    %1235 = vmatpush1.msra.mxu0 0.0
    %1236 = vmatprep.subr.mxu0 0.0
    %1237 = vmatpush1.msra.mxu0 0.0
    %1238 = vmatprep.subr.mxu0 0.0
    %1239 = vmatpush1.msra.mxu0 0.0
    %1240 = vmatprep.subr.mxu0 0.0
    %1241 = vmatpush1.msra.mxu0 0.0
    %1242 = vmatprep.subr.mxu0 0.0
    %1243 = vmatpush1.msra.mxu0 0.0
    %1244 = vmatprep.mubr.f32.mxu0 0.0
    %1245 = vmatmul.mubr.f32.gmra.mrb[0].mxu0 %v1178
    %v1246 = vpop.f32.mrb[0].mxu0
    %v1247 = vadd.f32 0.0, %v1246
    %v1248 = vpop.f32.mrb[0].mxu0
    %v1249 = vadd.f32 0.0, %v1248
    %1250 = vdwg.mxu0
    %1251 = vmatprep.subr.mxu0 %v573
    %1252 = vmatpush1.msra.mxu0 %v572
    %1253 = vmatprep.subr.mxu0 %v577
    %1254 = vmatpush1.msra.mxu0 %v576
    %1255 = vmatprep.subr.mxu0 %v581
    %1256 = vmatpush1.msra.mxu0 %v580
    %1257 = vmatprep.subr.mxu0 %v585
    %1258 = vmatpush1.msra.mxu0 %v584
    %1259 = vmatprep.subr.mxu0 %v589
    %1260 = vmatpush1.msra.mxu0 %v588
    %1261 = vmatprep.subr.mxu0 %v593
    %1262 = vmatpush1.msra.mxu0 %v592
    %1263 = vmatprep.subr.mxu0 %v597
    %1264 = vmatpush1.msra.mxu0 %v596
    %1265 = vmatprep.subr.mxu0 %v601
    %1266 = vmatpush1.msra.mxu0 %v600
    %1267 = vmatprep.subr.mxu0 %v605
    %1268 = vmatpush1.msra.mxu0 %v604
    %1269 = vmatprep.subr.mxu0 %v609
    %1270 = vmatpush1.msra.mxu0 %v608
    %1271 = vmatprep.subr.mxu0 %v613
    %1272 = vmatpush1.msra.mxu0 %v612
    %1273 = vmatprep.subr.mxu0 %v617
    %1274 = vmatpush1.msra.mxu0 %v616
    %1275 = vmatprep.subr.mxu0 %v621
    %1276 = vmatpush1.msra.mxu0 %v620
    %1277 = vmatprep.subr.mxu0 %v625
    %1278 = vmatpush1.msra.mxu0 %v624
    %1279 = vmatprep.subr.mxu0 %v629
    %1280 = vmatpush1.msra.mxu0 %v628
    %1281 = vmatprep.subr.mxu0 %v633
    %1282 = vmatpush1.msra.mxu0 %v632
    %1283 = vmatprep.subr.mxu0 0.0
    %1284 = vmatpush1.msra.mxu0 0.0
    %1285 = vmatprep.subr.mxu0 0.0
    %1286 = vmatpush1.msra.mxu0 0.0
    %1287 = vmatprep.subr.mxu0 0.0
    %1288 = vmatpush1.msra.mxu0 0.0
    %1289 = vmatprep.subr.mxu0 0.0
    %1290 = vmatpush1.msra.mxu0 0.0
    %1291 = vmatprep.subr.mxu0 0.0
    %1292 = vmatpush1.msra.mxu0 0.0
    %1293 = vmatprep.subr.mxu0 0.0
    %1294 = vmatpush1.msra.mxu0 0.0
    %1295 = vmatprep.subr.mxu0 0.0
    %1296 = vmatpush1.msra.mxu0 0.0
    %1297 = vmatprep.subr.mxu0 0.0
    %1298 = vmatpush1.msra.mxu0 0.0
    %1299 = vmatprep.subr.mxu0 0.0
    %1300 = vmatpush1.msra.mxu0 0.0
    %1301 = vmatprep.subr.mxu0 0.0
    %1302 = vmatpush1.msra.mxu0 0.0
    %1303 = vmatprep.subr.mxu0 0.0
    %1304 = vmatpush1.msra.mxu0 0.0
    %1305 = vmatprep.subr.mxu0 0.0
    %1306 = vmatpush1.msra.mxu0 0.0
    %1307 = vmatprep.subr.mxu0 0.0
    %1308 = vmatpush1.msra.mxu0 0.0
    %1309 = vmatprep.subr.mxu0 0.0
    %1310 = vmatpush1.msra.mxu0 0.0
    %1311 = vmatprep.subr.mxu0 0.0
    %1312 = vmatpush1.msra.mxu0 0.0
    %1313 = vmatprep.subr.mxu0 0.0
    %1314 = vmatpush1.msra.mxu0 0.0
    %1315 = vmatprep.mubr.f32.mxu0 0.0
    %1316 = vmatmul.mubr.f32.gmra.mrb[0].mxu0 %v1178
    %v1317 = vpop.f32.mrb[0].mxu0
    %v1318 = vadd.f32 0.0, %v1317
    %v1319 = vpop.f32.mrb[0].mxu0
    %v1320 = vadd.f32 0.0, %v1319
    %1321 = vdwg.mxu0
    %v1326 = vrot.slane %v1247, 2
    %v1327 = vrot.slane %v1249, 2
    %v1328 = vrot.slane %v1318, 2
    %v1329 = vrot.slane %v1320, 2
    %v1334 = vadd.f32 %v483, %v1326
    %v1335 = vadd.f32 %v485, %v1327
    %v1336 = vadd.f32 %v560, %v1328
    %v1337 = vadd.f32 %v562, %v1329
    %v1338 = vxor.u32 %v1334, 2147483648
    %v1339 = vmul.f32 %v1338, 1.442695
    %v1340 = vpow.pop %v1339
    %v1341 = vadd.f32 %v1340, 1.0
    %v1342 = vrcp.pop %v1341
    %v1343 = vmul.f32 1.0, %v1342
    %v1344 = vxor.u32 %v1335, 2147483648
    %v1345 = vmul.f32 %v1344, 1.442695
    %v1346 = vpow.pop %v1345
    %v1347 = vadd.f32 %v1346, 1.0
    %v1348 = vrcp.pop %v1347
    %v1349 = vmul.f32 1.0, %v1348
    %v1350 = vtanh.pop %v1336
    %v1351 = vxor.u32 %v1337, 2147483648
    %v1352 = vmul.f32 %v1351, 1.442695
    %v1353 = vpow.pop %v1352
    %v1354 = vadd.f32 %v1353, 1.0
    %v1355 = vrcp.pop %v1354
    %v1356 = vmul.f32 1.0, %v1355
    %v1358 = vrot.slane %v1174, 6
    %v1360 = vmul.f32 %v1349, %v1358
    %v1361 = vmul.f32 %v1343, %v1350
    %v1362 = vadd.f32 %v1360, %v1361
    %v1363 = vtanh.pop %v1362
    %v1364 = vmul.f32 %v1356, %v1363
    %v1366 = vrot.slane %v1364, 6
    %1368 = vmatprep.subr.mxu0 %v571
    %1369 = vmatpush1.msra.mxu0 %v570
    %1370 = vmatprep.subr.mxu0 %v575
    %1371 = vmatpush1.msra.mxu0 %v574
    %1372 = vmatprep.subr.mxu0 %v579
    %1373 = vmatpush1.msra.mxu0 %v578
    %1374 = vmatprep.subr.mxu0 %v583
    %1375 = vmatpush1.msra.mxu0 %v582
    %1376 = vmatprep.subr.mxu0 %v587
    %1377 = vmatpush1.msra.mxu0 %v586
    %1378 = vmatprep.subr.mxu0 %v591
    %1379 = vmatpush1.msra.mxu0 %v590
    %1380 = vmatprep.subr.mxu0 %v595
    %1381 = vmatpush1.msra.mxu0 %v594
    %1382 = vmatprep.subr.mxu0 %v599
    %1383 = vmatpush1.msra.mxu0 %v598
    %1384 = vmatprep.subr.mxu0 %v603
    %1385 = vmatpush1.msra.mxu0 %v602
    %1386 = vmatprep.subr.mxu0 %v607
    %1387 = vmatpush1.msra.mxu0 %v606
    %1388 = vmatprep.subr.mxu0 %v611
    %1389 = vmatpush1.msra.mxu0 %v610
    %1390 = vmatprep.subr.mxu0 %v615
    %1391 = vmatpush1.msra.mxu0 %v614
    %1392 = vmatprep.subr.mxu0 %v619
    %1393 = vmatpush1.msra.mxu0 %v618
    %1394 = vmatprep.subr.mxu0 %v623
    %1395 = vmatpush1.msra.mxu0 %v622
    %1396 = vmatprep.subr.mxu0 %v627
    %1397 = vmatpush1.msra.mxu0 %v626
    %1398 = vmatprep.subr.mxu0 %v631
    %1399 = vmatpush1.msra.mxu0 %v630
    %1400 = vmatprep.subr.mxu0 0.0
    %1401 = vmatpush1.msra.mxu0 0.0
    %1402 = vmatprep.subr.mxu0 0.0
    %1403 = vmatpush1.msra.mxu0 0.0
    %1404 = vmatprep.subr.mxu0 0.0
    %1405 = vmatpush1.msra.mxu0 0.0
    %1406 = vmatprep.subr.mxu0 0.0
    %1407 = vmatpush1.msra.mxu0 0.0
    %1408 = vmatprep.subr.mxu0 0.0
    %1409 = vmatpush1.msra.mxu0 0.0
    %1410 = vmatprep.subr.mxu0 0.0
    %1411 = vmatpush1.msra.mxu0 0.0
    %1412 = vmatprep.subr.mxu0 0.0
    %1413 = vmatpush1.msra.mxu0 0.0
    %1414 = vmatprep.subr.mxu0 0.0
    %1415 = vmatpush1.msra.mxu0 0.0
    %1416 = vmatprep.subr.mxu0 0.0
    %1417 = vmatpush1.msra.mxu0 0.0
    %1418 = vmatprep.subr.mxu0 0.0
    %1419 = vmatpush1.msra.mxu0 0.0
    %1420 = vmatprep.subr.mxu0 0.0
    %1421 = vmatpush1.msra.mxu0 0.0
    %1422 = vmatprep.subr.mxu0 0.0
    %1423 = vmatpush1.msra.mxu0 0.0
    %1424 = vmatprep.subr.mxu0 0.0
    %1425 = vmatpush1.msra.mxu0 0.0
    %1426 = vmatprep.subr.mxu0 0.0
    %1427 = vmatpush1.msra.mxu0 0.0
    %1428 = vmatprep.subr.mxu0 0.0
    %1429 = vmatpush1.msra.mxu0 0.0
    %1430 = vmatprep.subr.mxu0 0.0
    %1431 = vmatpush1.msra.mxu0 0.0
    %1432 = vmatprep.mubr.f32.mxu0 0.0
    %1433 = vmatmul.mubr.f32.gmra.mrb[0].mxu0 %v1366
    %v1434 = vpop.f32.mrb[0].mxu0
    %v1435 = vadd.f32 0.0, %v1434
    %v1436 = vpop.f32.mrb[0].mxu0
    %v1437 = vadd.f32 0.0, %v1436
    %1438 = vdwg.mxu0
    %1439 = vmatprep.subr.mxu0 %v573
    %1440 = vmatpush1.msra.mxu0 %v572
    %1441 = vmatprep.subr.mxu0 %v577
    %1442 = vmatpush1.msra.mxu0 %v576
    %1443 = vmatprep.subr.mxu0 %v581
    %1444 = vmatpush1.msra.mxu0 %v580
    %1445 = vmatprep.subr.mxu0 %v585
    %1446 = vmatpush1.msra.mxu0 %v584
    %1447 = vmatprep.subr.mxu0 %v589
    %1448 = vmatpush1.msra.mxu0 %v588
    %1449 = vmatprep.subr.mxu0 %v593
    %1450 = vmatpush1.msra.mxu0 %v592
    %1451 = vmatprep.subr.mxu0 %v597
    %1452 = vmatpush1.msra.mxu0 %v596
    %1453 = vmatprep.subr.mxu0 %v601
    %1454 = vmatpush1.msra.mxu0 %v600
    %1455 = vmatprep.subr.mxu0 %v605
    %1456 = vmatpush1.msra.mxu0 %v604
    %1457 = vmatprep.subr.mxu0 %v609
    %1458 = vmatpush1.msra.mxu0 %v608
    %1459 = vmatprep.subr.mxu0 %v613
    %1460 = vmatpush1.msra.mxu0 %v612
    %1461 = vmatprep.subr.mxu0 %v617
    %1462 = vmatpush1.msra.mxu0 %v616
    %1463 = vmatprep.subr.mxu0 %v621
    %1464 = vmatpush1.msra.mxu0 %v620
    %1465 = vmatprep.subr.mxu0 %v625
    %1466 = vmatpush1.msra.mxu0 %v624
    %1467 = vmatprep.subr.mxu0 %v629
    %1468 = vmatpush1.msra.mxu0 %v628
    %1469 = vmatprep.subr.mxu0 %v633
    %1470 = vmatpush1.msra.mxu0 %v632
    %1471 = vmatprep.subr.mxu0 0.0
    %1472 = vmatpush1.msra.mxu0 0.0
    %1473 = vmatprep.subr.mxu0 0.0
    %1474 = vmatpush1.msra.mxu0 0.0
    %1475 = vmatprep.subr.mxu0 0.0
    %1476 = vmatpush1.msra.mxu0 0.0
    %1477 = vmatprep.subr.mxu0 0.0
    %1478 = vmatpush1.msra.mxu0 0.0
    %1479 = vmatprep.subr.mxu0 0.0
    %1480 = vmatpush1.msra.mxu0 0.0
    %1481 = vmatprep.subr.mxu0 0.0
    %1482 = vmatpush1.msra.mxu0 0.0
    %1483 = vmatprep.subr.mxu0 0.0
    %1484 = vmatpush1.msra.mxu0 0.0
    %1485 = vmatprep.subr.mxu0 0.0
    %1486 = vmatpush1.msra.mxu0 0.0
    %1487 = vmatprep.subr.mxu0 0.0
    %1488 = vmatpush1.msra.mxu0 0.0
    %1489 = vmatprep.subr.mxu0 0.0
    %1490 = vmatpush1.msra.mxu0 0.0
    %1491 = vmatprep.subr.mxu0 0.0
    %1492 = vmatpush1.msra.mxu0 0.0
    %1493 = vmatprep.subr.mxu0 0.0
    %1494 = vmatpush1.msra.mxu0 0.0
    %1495 = vmatprep.subr.mxu0 0.0
    %1496 = vmatpush1.msra.mxu0 0.0
    %1497 = vmatprep.subr.mxu0 0.0
    %1498 = vmatpush1.msra.mxu0 0.0
    %1499 = vmatprep.subr.mxu0 0.0
    %1500 = vmatpush1.msra.mxu0 0.0
    %1501 = vmatprep.subr.mxu0 0.0
    %1502 = vmatpush1.msra.mxu0 0.0
    %1503 = vmatprep.mubr.f32.mxu0 0.0
    %1504 = vmatmul.mubr.f32.gmra.mrb[0].mxu0 %v1366
    %v1505 = vpop.f32.mrb[0].mxu0
    %v1506 = vadd.f32 0.0, %v1505
    %v1507 = vpop.f32.mrb[0].mxu0
    %v1508 = vadd.f32 0.0, %v1507
    %1509 = vdwg.mxu0
    %v1510 = vadd.f32 %v489, %v1435
    %v1511 = vadd.f32 %v491, %v1437
    %v1512 = vadd.f32 %v566, %v1506
    %v1513 = vadd.f32 %v568, %v1508
    %v1514 = vxor.u32 %v1510, 2147483648
    %v1515 = vmul.f32 %v1514, 1.442695
    %v1516 = vpow.pop %v1515
    %v1517 = vadd.f32 %v1516, 1.0
    %v1518 = vrcp.pop %v1517
    %v1519 = vmul.f32 1.0, %v1518
    %v1520 = vxor.u32 %v1511, 2147483648
    %v1521 = vmul.f32 %v1520, 1.442695
    %v1522 = vpow.pop %v1521
    %v1523 = vadd.f32 %v1522, 1.0
    %v1524 = vrcp.pop %v1523
    %v1525 = vmul.f32 1.0, %v1524
    %v1526 = vtanh.pop %v1512
    %v1527 = vxor.u32 %v1513, 2147483648
    %v1528 = vmul.f32 %v1527, 1.442695
    %v1529 = vpow.pop %v1528
    %v1530 = vadd.f32 %v1529, 1.0
    %v1531 = vrcp.pop %v1530
    %v1532 = vmul.f32 1.0, %v1531
    %v1534 = vrot.slane %v1362, 6
    %v1536 = vmul.f32 %v1525, %v1534
    %v1537 = vmul.f32 %v1519, %v1526
    %v1538 = vadd.f32 %v1536, %v1537
    %v1539 = vtanh.pop %v1538
    %v1540 = vmul.f32 %v1532, %v1539
    %v1541 = vld [vmem:[#allocation11] sm:$0xff]
    %v1542 = vld [vmem:[#allocation11 + $0x8] sm:$0xff]
    %v1543 = vld [vmem:[#allocation11 + $0x10] sm:$0xff]
    %v1544 = vld [vmem:[#allocation11 + $0x18] sm:$0xff]
    %v1545 = vld [vmem:[#allocation11 + $0x20] sm:$0xff]
    %v1546 = vld [vmem:[#allocation11 + $0x28] sm:$0xff]
    %v1547 = vld [vmem:[#allocation11 + $0x30] sm:$0xff]
    %v1548 = vld [vmem:[#allocation11 + $0x38] sm:$0xff]
    %v1549 = vld [vmem:[#allocation11 + $0x40] sm:$0xff]
    %v1550 = vld [vmem:[#allocation11 + $0x48] sm:$0xff]
    %v1551 = vld [vmem:[#allocation11 + $0x50] sm:$0xff]
    %v1552 = vld [vmem:[#allocation11 + $0x58] sm:$0xff]
    %v1553 = vld [vmem:[#allocation11 + $0x60] sm:$0xff]
    %v1554 = vld [vmem:[#allocation11 + $0x68] sm:$0xff]
    %v1555 = vld [vmem:[#allocation11 + $0x70] sm:$0xff]
    %v1556 = vld [vmem:[#allocation11 + $0x78] sm:$0xff]
    %v1557 = vld [vmem:[%s8] sm:$0x1]
    %v1559 = vlaneseq
    %v1560 = vshrl.u32 %v1559, 7
    %v1561 = vsub.s32 0, %v1560
    %v1562 = vrot.slane %v1557, %v1561
    %1564 = vmatprep.subr.mxu0 0.0
    %1565 = vmatpush1.msra.mxu0 %v1541
    %1566 = vmatprep.subr.mxu0 0.0
    %1567 = vmatpush1.msra.mxu0 %v1542
    %1568 = vmatprep.subr.mxu0 0.0
    %1569 = vmatpush1.msra.mxu0 %v1543
    %1570 = vmatprep.subr.mxu0 0.0
    %1571 = vmatpush1.msra.mxu0 %v1544
    %1572 = vmatprep.subr.mxu0 0.0
    %1573 = vmatpush1.msra.mxu0 %v1545
    %1574 = vmatprep.subr.mxu0 0.0
    %1575 = vmatpush1.msra.mxu0 %v1546
    %1576 = vmatprep.subr.mxu0 0.0
    %1577 = vmatpush1.msra.mxu0 %v1547
    %1578 = vmatprep.subr.mxu0 0.0
    %1579 = vmatpush1.msra.mxu0 %v1548
    %1580 = vmatprep.subr.mxu0 0.0
    %1581 = vmatpush1.msra.mxu0 %v1549
    %1582 = vmatprep.subr.mxu0 0.0
    %1583 = vmatpush1.msra.mxu0 %v1550
    %1584 = vmatprep.subr.mxu0 0.0
    %1585 = vmatpush1.msra.mxu0 %v1551
    %1586 = vmatprep.subr.mxu0 0.0
    %1587 = vmatpush1.msra.mxu0 %v1552
    %1588 = vmatprep.subr.mxu0 0.0
    %1589 = vmatpush1.msra.mxu0 %v1553
    %1590 = vmatprep.subr.mxu0 0.0
    %1591 = vmatpush1.msra.mxu0 %v1554
    %1592 = vmatprep.subr.mxu0 0.0
    %1593 = vmatpush1.msra.mxu0 %v1555
    %1594 = vmatprep.subr.mxu0 0.0
    %1595 = vmatpush1.msra.mxu0 %v1556
    %1596 = vmatprep.subr.mxu0 0.0
    %1597 = vmatpush1.msra.mxu0 0.0
    %1598 = vmatprep.subr.mxu0 0.0
    %1599 = vmatpush1.msra.mxu0 0.0
    %1600 = vmatprep.subr.mxu0 0.0
    %1601 = vmatpush1.msra.mxu0 0.0
    %1602 = vmatprep.subr.mxu0 0.0
    %1603 = vmatpush1.msra.mxu0 0.0
    %1604 = vmatprep.subr.mxu0 0.0
    %1605 = vmatpush1.msra.mxu0 0.0
    %1606 = vmatprep.subr.mxu0 0.0
    %1607 = vmatpush1.msra.mxu0 0.0
    %1608 = vmatprep.subr.mxu0 0.0
    %1609 = vmatpush1.msra.mxu0 0.0
    %1610 = vmatprep.subr.mxu0 0.0
    %1611 = vmatpush1.msra.mxu0 0.0
    %1612 = vmatprep.subr.mxu0 0.0
    %1613 = vmatpush1.msra.mxu0 0.0
    %1614 = vmatprep.subr.mxu0 0.0
    %1615 = vmatpush1.msra.mxu0 0.0
    %1616 = vmatprep.subr.mxu0 0.0
    %1617 = vmatpush1.msra.mxu0 0.0
    %1618 = vmatprep.subr.mxu0 0.0
    %1619 = vmatpush1.msra.mxu0 0.0
    %1620 = vmatprep.subr.mxu0 0.0
    %1621 = vmatpush1.msra.mxu0 0.0
    %1622 = vmatprep.subr.mxu0 0.0
    %1623 = vmatpush1.msra.mxu0 0.0
    %1624 = vmatprep.subr.mxu0 0.0
    %1625 = vmatpush1.msra.mxu0 0.0
    %1626 = vmatprep.subr.mxu0 0.0
    %1627 = vmatpush1.msra.mxu0 0.0
    %1628 = vmatprep.mubr.f32.mxu0 0.0
    %1629 = vmatmul.mubr.f32.gmra.mrb[0].mxu0 %v1540
    %v1630 = vpop.f32.mrb[0].mxu0
    %v1631 = vadd.f32 %v1562, %v1630
    %v1632 = vpop.f32.mrb[0].mxu0
    %1633 = vdwg.mxu0
    %1634 = vst [vmem:[#allocation13] sm:$0x3] %v1631
    // Predicated region
    $region62: #{tpu_custom_call.1} parent=1 // pred_check
      _
    $region63: #{tpu_custom_call.1} parent=1 // pred_check_branch
      %1636 = sbr.rel (0) target = $region65
    $region64: #{tpu_custom_call.1} parent=1 // pred_region
      %s1638 = ssub.s32 32, 32
      %1639 = vsyncadd [#allocation4], %s1638
      %s1641 = sshll.u32 [#allocation13], 4
      %s1642 = int_to_ptr.vmem [resolvable:$true] %s1641
      %1644 = dma.vmem_to_hbm [thread:$0]  %s1642, 32, %s9, [#allocation4]
    $region65: #{tpu_custom_call.1} parent=1 // pred_fallthru
      _
    // Predicated region
    $region66: #{tpu_custom_call.1} parent=1 // pred_check
      _
    $region67: #{tpu_custom_call.1} parent=1 // pred_check_branch
      %1646 = sbr.rel (0) target = $region69
    $region68: #{tpu_custom_call.1} parent=1 // pred_region
      %1647 = dma.done [#allocation4], 32
    $region69: #{tpu_custom_call.1} parent=1 // pred_fallthru
      _
    %1648 = vsyncpa [#allocation3], 1
    %1649 = vsyncpa [#allocation6], 1
    %1650 = vsyncpa [#allocation9], 1
    %1651 = vsyncpa [#allocation12], 1
    %1652 = vsyncpa [#allocation4], 1

</llo_original>
